<compile_context>
chip_gen: v6e
topology: v6e:2x2x1
jax: 0.10.0
libtpu: 0.0.40
codegen_flags: <defaults>
</compile_context>

<pallas_src>
import functools
import math

import jax
import jax.numpy as jnp
from jax.experimental import pallas as pl
from jax.experimental.pallas import tpu as pltpu

COMBINED_DIM = 1200          # matches the PyTorch module constant
HIDDEN = 10                  # MINE hidden_size default
LOG2E = math.log2(math.e)    # np.log2(np.exp(1))


def _mine_partials_kernel(x_ref, y_ref, w1x_ref, w1y_ref, b1_ref, w2_ref, b2_ref,
                          sum_ref, max_ref, den_ref, *, n_rows, tile_n):
    """One batch tile: fused concat + MLP; accumulate sum(logits) and a
    streaming logsumexp state into the resident (1,1) output blocks."""
    step = pl.program_id(0)

    @pl.when(step == 0)
    def _init():
        sum_ref[...] = jnp.zeros_like(sum_ref)
        max_ref[...] = jnp.full_like(max_ref, -jnp.inf)
        den_ref[...] = jnp.zeros_like(den_ref)

    # cat([x, y], 1) @ W1  ==  x @ W1[:dx] + y @ W1[dx:]  (weights pre-split in
    # the wrapper; dtypes already matched to x / y for the MXU).
    h = (jnp.dot(x_ref[...], w1x_ref[...], preferred_element_type=jnp.float32)
         + jnp.dot(y_ref[...], w1y_ref[...], preferred_element_type=jnp.float32)
         + b1_ref[...])                               # (tile_n, H) f32
    h = jnp.maximum(h, 0.0)                           # ReLU

    # (tile_n,10) x (10,1) is lane-sparse on the MXU -> VPU multiply + row reduce.
    logits = (jnp.sum(h * w2_ref[...], axis=1, keepdims=True)
              + b2_ref[...])                          # (tile_n, 1) f32

    # Mask rows beyond the true batch size (ragged last tile / block padding).
    row = step * tile_n + jax.lax.broadcasted_iota(jnp.int32, logits.shape, 0)
    valid = row < n_rows
    logits_neg = jnp.where(valid, logits, -jnp.inf)

    tile_sum = jnp.sum(jnp.where(valid, logits, 0.0), axis=0, keepdims=True)
    tile_max = jnp.max(logits_neg, axis=0, keepdims=True)

    # Streaming logsumexp accumulation (overflow-safe).  exp(-inf - m_new) == 0,
    # so padded rows vanish from the denominator without an extra select.
    m_old = max_ref[...]
    m_new = jnp.maximum(m_old, tile_max)
    p_sum = jnp.sum(jnp.exp(logits_neg - m_new), axis=0, keepdims=True)
    den_ref[...] = den_ref[...] * jnp.exp(m_old - m_new) + p_sum
    max_ref[...] = m_new
    sum_ref[...] = sum_ref[...] + tile_sum


def mine_loss_pallas(x, y, w1, b1, w2, b2, *, max_tile_n=2048,
                     vmem_budget_bytes=16 * 1024 * 1024):
    """MINE.forward(x, y) as a batch-tiled Pallas call returning a scalar.

    x/y are consumed in their native dtype (no wrapper-side cast, which would
    add a full extra HBM pass over the dominant activation traffic)."""
    n, dx = x.shape
    dy = y.shape[1]
    hidden = w1.shape[1]
    assert w1.shape[0] == dx + dy

    # Tiny weight prep in the wrapper (48 KB total — effectively free):
    # split W1 for the fused concat and match dtypes to the activations.
    w1x = w1[:dx].astype(x.dtype)
    w1y = w1[dx:].astype(y.dtype)

    # Tile so double-buffered x+y tiles stay within the VMEM budget; keep the
    # sublane dim a multiple of 8.
    bytes_per_row = dx * x.dtype.itemsize + dy * y.dtype.itemsize
    cap = max(256, (vmem_budget_bytes // (2 * bytes_per_row)) // 256 * 256)
    tile_n = int(min(max_tile_n, cap, -(-n // 8) * 8))
    tile_n = max(8, (tile_n // 8) * 8)
    grid = (pl.cdiv(n, tile_n),)

    kernel = functools.partial(_mine_partials_kernel, n_rows=n, tile_n=tile_n)

    cost = pl.CostEstimate(
        flops=2 * n * (dx + dy) * hidden + 4 * n * hidden,
        transcendentals=n,
        bytes_accessed=(n * dx * x.dtype.itemsize
                        + n * dy * y.dtype.itemsize
                        + (dx + dy + 2) * hidden * 4 + 3 * 4),
    )

    scalar_out = jax.ShapeDtypeStruct((1, 1), jnp.float32)
    scalar_spec = pl.BlockSpec((1, 1), lambda i: (0, 0))

    sum_l, m, den = pl.pallas_call(
        kernel,
        grid=grid,
        in_specs=[
            pl.BlockSpec((tile_n, dx), lambda i: (i, 0)),        # x tile
            pl.BlockSpec((tile_n, dy), lambda i: (i, 0)),        # y tile
            pl.BlockSpec((dx, hidden), lambda i: (0, 0)),        # W1[:dx] (resident)
            pl.BlockSpec((dy, hidden), lambda i: (0, 0)),        # W1[dx:] (resident)
            pl.BlockSpec((1, hidden), lambda i: (0, 0)),         # b1 row
            pl.BlockSpec((1, hidden), lambda i: (0, 0)),         # w2 row
            pl.BlockSpec((1, 1), lambda i: (0, 0)),              # b2
        ],
        out_specs=(scalar_spec, scalar_spec, scalar_spec),
        out_shape=(scalar_out, scalar_out, scalar_out),
        compiler_params=pltpu.CompilerParams(
            dimension_semantics=("arbitrary",),   # reduction axis (accumulator)
            vmem_limit_bytes=32 * 1024 * 1024,
        ),
        cost_estimate=cost,
    )(
        x, y, w1x, w1y,
        b1.reshape(1, hidden).astype(jnp.float32),
        w2.reshape(1, hidden).astype(jnp.float32),   # (H,1) -> (1,H) row
        b2.reshape(1, 1).astype(jnp.float32),
    )

    # Tiny finalize in JAX: log(mean(exp(l))) = m + log(den) - log(N).
    n_f = jnp.float32(n)
    mean_logits = sum_l[0, 0] / n_f
    log_mean_exp = m[0, 0] + jnp.log(den[0, 0]) - jnp.log(n_f)
    return (-LOG2E) * (mean_logits - log_mean_exp)


def mine_loss_ref(x, y, w1, b1, w2, b2):
    """Pure-JAX reference (mirrors the PyTorch MINE.forward)."""
    inputs = jnp.concatenate([x, y], axis=1)
    h = jnp.maximum(inputs @ w1 + b1, 0.0)
    logits = h @ w2 + b2
    return (-LOG2E) * (jnp.mean(logits) - jnp.log(jnp.mean(jnp.exp(logits))))


if __name__ == "__main__":
    key = jax.random.PRNGKey(0)
    k_x, k_y, k_w1, k_b1, k_w2, k_b2 = jax.random.split(key, 6)

    # Small, module-consistent shapes: img/desc embeddings of 600 dims each so
    # the concatenated dim equals COMBINED_DIM = 1200.  N=300 with tile 128
    # exercises a 3-step grid with a ragged (masked) last tile.
    N, DX, DY = 300, COMBINED_DIM // 2, COMBINED_DIM // 2
    TILE = 128

    img_emb = jax.random.normal(k_x, (N, DX), dtype=jnp.float32)
    desc_emb = jax.random.normal(k_y, (N, DY), dtype=jnp.float32)

    # Deterministic parameter init (shapes from MINE.__init__: 1200->10->1).
    bound1 = 1.0 / math.sqrt(COMBINED_DIM)
    w1 = jax.random.uniform(k_w1, (COMBINED_DIM, HIDDEN), jnp.float32,
                            -bound1, bound1)
    b1 = jax.random.uniform(k_b1, (HIDDEN,), jnp.float32, -bound1, bound1)
    bound2 = 1.0 / math.sqrt(HIDDEN)
    w2 = jax.random.uniform(k_w2, (HIDDEN, 1), jnp.float32, -bound2, bound2)
    b2 = jax.random.uniform(k_b2, (1,), jnp.float32, -bound2, bound2)

    ref = mine_loss_ref(img_emb, desc_emb, w1, b1, w2, b2)

    # Native f32 activations, multi-tile grid with ragged last tile: tight check
    # (streaming logsumexp only reorders reductions).
    loss_f32 = jax.block_until_ready(
        mine_loss_pallas(img_emb, desc_emb, w1, b1, w2, b2, max_tile_n=TILE))
    assert jnp.allclose(loss_f32, ref, atol=1e-5, rtol=1e-4), (loss_f32, ref)

    # Upstream-bf16 activation path (kernel reads bf16 directly; weights cast
    # to bf16 in the wrapper): looser tolerance.
    loss_bf16 = jax.block_until_ready(
        mine_loss_pallas(img_emb.astype(jnp.bfloat16),
                         desc_emb.astype(jnp.bfloat16),
                         w1, b1, w2, b2, max_tile_n=TILE))
    assert jnp.allclose(loss_bf16, ref, atol=5e-2, rtol=5e-2), (loss_bf16, ref)

    # Default path: tile size derived from the VMEM budget (single tile here).
    loss_default = jax.block_until_ready(
        mine_loss_pallas(img_emb, desc_emb, w1, b1, w2, b2))
    assert jnp.allclose(loss_default, ref, atol=1e-5, rtol=1e-4), (loss_default, ref)

    print("KERNEL_OK")
</pallas_src>

<mosaic_0001>
module attributes {stable_mosaic.version = 11 : i64} {
  func.func @_mine_partials_kernel(%arg0: i32, %arg1: memref<128x600xf32, #tpu.memory_space<vmem>>, %arg2: memref<128x600xf32, #tpu.memory_space<vmem>>, %arg3: memref<600x10xf32, #tpu.memory_space<vmem>>, %arg4: memref<600x10xf32, #tpu.memory_space<vmem>>, %arg5: memref<1x10xf32, #tpu.memory_space<vmem>>, %arg6: memref<1x10xf32, #tpu.memory_space<vmem>>, %arg7: memref<1x1xf32, #tpu.memory_space<vmem>>, %arg8: memref<1x1xf32, #tpu.memory_space<vmem>>, %arg9: memref<1x1xf32, #tpu.memory_space<vmem>>, %arg10: memref<1x1xf32, #tpu.memory_space<vmem>>) attributes {dimension_semantics = [#tpu.dimension_semantics<arbitrary>], iteration_bounds = array<i64: 3>, scalar_prefetch = 0 : i64, scratch_operands = 0 : i64, tpu.core_type = #tpu.core_type<tc>, window_params = [{transform_indices = @transform_0, window_bounds = array<i64: 128, 600>}, {transform_indices = @transform_1, window_bounds = array<i64: 128, 600>}, {pipeline_mode = #tpu.pipeline_mode<synchronous>, transform_indices = @transform_2, window_bounds = array<i64: 600, 10>}, {pipeline_mode = #tpu.pipeline_mode<synchronous>, transform_indices = @transform_3, window_bounds = array<i64: 600, 10>}, {pipeline_mode = #tpu.pipeline_mode<synchronous>, transform_indices = @transform_4, window_bounds = array<i64: 1, 10>}, {pipeline_mode = #tpu.pipeline_mode<synchronous>, transform_indices = @transform_5, window_bounds = array<i64: 1, 10>}, {pipeline_mode = #tpu.pipeline_mode<synchronous>, transform_indices = @transform_6, window_bounds = array<i64: 1, 1>}, {pipeline_mode = #tpu.pipeline_mode<synchronous>, transform_indices = @transform_7, window_bounds = array<i64: 1, 1>}, {pipeline_mode = #tpu.pipeline_mode<synchronous>, transform_indices = @transform_8, window_bounds = array<i64: 1, 1>}, {pipeline_mode = #tpu.pipeline_mode<synchronous>, transform_indices = @transform_9, window_bounds = array<i64: 1, 1>}]} {
    %c0_i32 = arith.constant 0 : i32
    %0 = arith.cmpi eq, %arg0, %c0_i32 : i32
    %1 = arith.extui %0 : i1 to i32
    %c0_i32_0 = arith.constant 0 : i32
    %2 = arith.cmpi ne, %1, %c0_i32_0 : i32
    scf.if %2 {
      %cst_34 = arith.constant 0.000000e+00 : f32
      %54 = vector.broadcast %cst_34 : f32 to vector<1x1xf32>
      %c0_35 = arith.constant 0 : index
      %c0_36 = arith.constant 0 : index
      %55 = vector.load %arg8[%c0_35, %c0_36] : memref<1x1xf32, #tpu.memory_space<vmem>>, vector<1x1xf32>
      tpu.vector_store %arg8[%c0_35, %c0_36], %54 {strides = array<i32>} : memref<1x1xf32, #tpu.memory_space<vmem>>, vector<1x1xf32>,
      %cst_37 = arith.constant 0xFF800000 : f32
      %56 = vector.broadcast %cst_37 : f32 to vector<1x1xf32>
      %c0_38 = arith.constant 0 : index
      %c0_39 = arith.constant 0 : index
      %57 = vector.load %arg9[%c0_38, %c0_39] : memref<1x1xf32, #tpu.memory_space<vmem>>, vector<1x1xf32>
      tpu.vector_store %arg9[%c0_38, %c0_39], %56 {strides = array<i32>} : memref<1x1xf32, #tpu.memory_space<vmem>>, vector<1x1xf32>,
      %cst_40 = arith.constant 0.000000e+00 : f32
      %58 = vector.broadcast %cst_40 : f32 to vector<1x1xf32>
      %c0_41 = arith.constant 0 : index
      %c0_42 = arith.constant 0 : index
      %59 = vector.load %arg10[%c0_41, %c0_42] : memref<1x1xf32, #tpu.memory_space<vmem>>, vector<1x1xf32>
      tpu.vector_store %arg10[%c0_41, %c0_42], %58 {strides = array<i32>} : memref<1x1xf32, #tpu.memory_space<vmem>>, vector<1x1xf32>,
    } else {
    }
    %c0 = arith.constant 0 : index
    %c0_1 = arith.constant 0 : index
    %3 = vector.load %arg1[%c0, %c0_1] : memref<128x600xf32, #tpu.memory_space<vmem>>, vector<128x600xf32>
    %c0_2 = arith.constant 0 : index
    %c0_3 = arith.constant 0 : index
    %4 = vector.load %arg3[%c0_2, %c0_3] : memref<600x10xf32, #tpu.memory_space<vmem>>, vector<600x10xf32>
    %cst = arith.constant dense<0.000000e+00> : vector<128x10xf32>
    %5 = tpu.matmul %3, %4, %cst {dimension_numbers = #tpu.dot_dimension_numbers<[1], [0], [0], [1], [0, 0, 1, 1], [], []>} : vector<128x600xf32>, vector<600x10xf32>, vector<128x10xf32> -> vector<128x10xf32>
    %c0_4 = arith.constant 0 : index
    %c0_5 = arith.constant 0 : index
    %6 = vector.load %arg2[%c0_4, %c0_5] : memref<128x600xf32, #tpu.memory_space<vmem>>, vector<128x600xf32>
    %c0_6 = arith.constant 0 : index
    %c0_7 = arith.constant 0 : index
    %7 = vector.load %arg4[%c0_6, %c0_7] : memref<600x10xf32, #tpu.memory_space<vmem>>, vector<600x10xf32>
    %cst_8 = arith.constant dense<0.000000e+00> : vector<128x10xf32>
    %8 = tpu.matmul %6, %7, %cst_8 {dimension_numbers = #tpu.dot_dimension_numbers<[1], [0], [0], [1], [0, 0, 1, 1], [], []>} : vector<128x600xf32>, vector<600x10xf32>, vector<128x10xf32> -> vector<128x10xf32>
    %9 = arith.addf %5, %8 : vector<128x10xf32>
    %c0_9 = arith.constant 0 : index
    %c0_10 = arith.constant 0 : index
    %10 = vector.load %arg5[%c0_9, %c0_10] : memref<1x10xf32, #tpu.memory_space<vmem>>, vector<1x10xf32>
    %11 = vector.broadcast %10 : vector<1x10xf32> to vector<128x10xf32>
    %12 = arith.addf %9, %11 : vector<128x10xf32>
    %cst_11 = arith.constant 0.000000e+00 : f32
    %13 = vector.broadcast %cst_11 : f32 to vector<128x10xf32>
    %14 = arith.maximumf %12, %13 : vector<128x10xf32>
    %c0_12 = arith.constant 0 : index
    %c0_13 = arith.constant 0 : index
    %15 = vector.load %arg6[%c0_12, %c0_13] : memref<1x10xf32, #tpu.memory_space<vmem>>, vector<1x10xf32>
    %16 = vector.broadcast %15 : vector<1x10xf32> to vector<128x10xf32>
    %17 = arith.mulf %14, %16 : vector<128x10xf32>
    %cst_14 = arith.constant dense<0.000000e+00> : vector<128xf32>
    %18 = vector.multi_reduction <add>, %17, %cst_14 [1] : vector<128x10xf32> to vector<128xf32>
    %19 = vector.shape_cast %18 : vector<128xf32> to vector<128x1xf32>
    %c0_15 = arith.constant 0 : index
    %c0_16 = arith.constant 0 : index
    %20 = vector.load %arg7[%c0_15, %c0_16] : memref<1x1xf32, #tpu.memory_space<vmem>>, vector<1x1xf32>
    %21 = vector.broadcast %20 : vector<1x1xf32> to vector<128x1xf32>
    %22 = arith.addf %19, %21 : vector<128x1xf32>
    %c128_i32 = arith.constant 128 : i32
    %23 = arith.muli %arg0, %c128_i32 : i32
    %24 = tpu.iota {dimensions = array<i32: 0>} : vector<128x1xi32>
    %25 = vector.broadcast %23 : i32 to vector<128x1xi32>
    %26 = arith.addi %25, %24 : vector<128x1xi32>
    %c300_i32 = arith.constant 300 : i32
    %27 = vector.broadcast %c300_i32 : i32 to vector<128x1xi32>
    %28 = arith.cmpi slt, %26, %27 : vector<128x1xi32>
    %cst_17 = arith.constant 0xFF800000 : f32
    %29 = vector.broadcast %cst_17 : f32 to vector<128x1xf32>
    %30 = arith.select %28, %22, %29 : vector<128x1xi1>, vector<128x1xf32>
    %cst_18 = arith.constant 0.000000e+00 : f32
    %31 = vector.broadcast %cst_18 : f32 to vector<128x1xf32>
    %32 = arith.select %28, %22, %31 : vector<128x1xi1>, vector<128x1xf32>
    %cst_19 = arith.constant dense<0.000000e+00> : vector<1xf32>
    %33 = vector.multi_reduction <add>, %32, %cst_19 [0] : vector<128x1xf32> to vector<1xf32>
    %34 = vector.shape_cast %33 : vector<1xf32> to vector<1x1xf32>
    %cst_20 = arith.constant dense<0xFF800000> : vector<1xf32>
    %35 = vector.multi_reduction <maximumf>, %30, %cst_20 [0] : vector<128x1xf32> to vector<1xf32>
    %36 = vector.shape_cast %35 : vector<1xf32> to vector<1x1xf32>
    %c0_21 = arith.constant 0 : index
    %c0_22 = arith.constant 0 : index
    %37 = vector.load %arg9[%c0_21, %c0_22] : memref<1x1xf32, #tpu.memory_space<vmem>>, vector<1x1xf32>
    %38 = arith.maximumf %37, %36 : vector<1x1xf32>
    %39 = vector.broadcast %38 : vector<1x1xf32> to vector<128x1xf32>
    %40 = arith.subf %30, %39 : vector<128x1xf32>
    %41 = math.exp %40 : vector<128x1xf32>
    %cst_23 = arith.constant dense<0.000000e+00> : vector<1xf32>
    %42 = vector.multi_reduction <add>, %41, %cst_23 [0] : vector<128x1xf32> to vector<1xf32>
    %43 = vector.shape_cast %42 : vector<1xf32> to vector<1x1xf32>
    %c0_24 = arith.constant 0 : index
    %c0_25 = arith.constant 0 : index
    %44 = vector.load %arg10[%c0_24, %c0_25] : memref<1x1xf32, #tpu.memory_space<vmem>>, vector<1x1xf32>
    %45 = arith.subf %37, %38 : vector<1x1xf32>
    %46 = math.exp %45 : vector<1x1xf32>
    %47 = arith.mulf %44, %46 : vector<1x1xf32>
    %48 = arith.addf %47, %43 : vector<1x1xf32>
    %c0_26 = arith.constant 0 : index
    %c0_27 = arith.constant 0 : index
    %49 = vector.load %arg10[%c0_26, %c0_27] : memref<1x1xf32, #tpu.memory_space<vmem>>, vector<1x1xf32>
    tpu.vector_store %arg10[%c0_26, %c0_27], %48 {strides = array<i32>} : memref<1x1xf32, #tpu.memory_space<vmem>>, vector<1x1xf32>,
    %c0_28 = arith.constant 0 : index
    %c0_29 = arith.constant 0 : index
    %50 = vector.load %arg9[%c0_28, %c0_29] : memref<1x1xf32, #tpu.memory_space<vmem>>, vector<1x1xf32>
    tpu.vector_store %arg9[%c0_28, %c0_29], %38 {strides = array<i32>} : memref<1x1xf32, #tpu.memory_space<vmem>>, vector<1x1xf32>,
    %c0_30 = arith.constant 0 : index
    %c0_31 = arith.constant 0 : index
    %51 = vector.load %arg8[%c0_30, %c0_31] : memref<1x1xf32, #tpu.memory_space<vmem>>, vector<1x1xf32>
    %52 = arith.addf %51, %34 : vector<1x1xf32>
    %c0_32 = arith.constant 0 : index
    %c0_33 = arith.constant 0 : index
    %53 = vector.load %arg8[%c0_32, %c0_33] : memref<1x1xf32, #tpu.memory_space<vmem>>, vector<1x1xf32>
    tpu.vector_store %arg8[%c0_32, %c0_33], %52 {strides = array<i32>} : memref<1x1xf32, #tpu.memory_space<vmem>>, vector<1x1xf32>,
    return
  }
  func.func @transform_0(%arg0: i32) -> (i32, i32) {
    %c0_i32 = arith.constant 0 : i32
    %c0_i32_0 = arith.constant 0 : i32
    return %arg0, %c0_i32 : i32, i32
  }
  func.func @transform_1(%arg0: i32) -> (i32, i32) {
    %c0_i32 = arith.constant 0 : i32
    %c0_i32_0 = arith.constant 0 : i32
    return %arg0, %c0_i32 : i32, i32
  }
  func.func @transform_2(%arg0: i32) -> (i32, i32) {
    %c0_i32 = arith.constant 0 : i32
    %c0_i32_0 = arith.constant 0 : i32
    %c0_i32_1 = arith.constant 0 : i32
    return %c0_i32, %c0_i32_0 : i32, i32
  }
  func.func @transform_3(%arg0: i32) -> (i32, i32) {
    %c0_i32 = arith.constant 0 : i32
    %c0_i32_0 = arith.constant 0 : i32
    %c0_i32_1 = arith.constant 0 : i32
    return %c0_i32, %c0_i32_0 : i32, i32
  }
  func.func @transform_4(%arg0: i32) -> (i32, i32) {
    %c0_i32 = arith.constant 0 : i32
    %c0_i32_0 = arith.constant 0 : i32
    %c0_i32_1 = arith.constant 0 : i32
    return %c0_i32, %c0_i32_0 : i32, i32
  }
  func.func @transform_5(%arg0: i32) -> (i32, i32) {
    %c0_i32 = arith.constant 0 : i32
    %c0_i32_0 = arith.constant 0 : i32
    %c0_i32_1 = arith.constant 0 : i32
    return %c0_i32, %c0_i32_0 : i32, i32
  }
  func.func @transform_6(%arg0: i32) -> (i32, i32) {
    %c0_i32 = arith.constant 0 : i32
    %c0_i32_0 = arith.constant 0 : i32
    %c0_i32_1 = arith.constant 0 : i32
    return %c0_i32, %c0_i32_0 : i32, i32
  }
  func.func @transform_7(%arg0: i32) -> (i32, i32) {
    %c0_i32 = arith.constant 0 : i32
    %c0_i32_0 = arith.constant 0 : i32
    %c0_i32_1 = arith.constant 0 : i32
    return %c0_i32, %c0_i32_0 : i32, i32
  }
  func.func @transform_8(%arg0: i32) -> (i32, i32) {
    %c0_i32 = arith.constant 0 : i32
    %c0_i32_0 = arith.constant 0 : i32
    %c0_i32_1 = arith.constant 0 : i32
    return %c0_i32, %c0_i32_0 : i32, i32
  }
  func.func @transform_9(%arg0: i32) -> (i32, i32) {
    %c0_i32 = arith.constant 0 : i32
    %c0_i32_0 = arith.constant 0 : i32
    %c0_i32_1 = arith.constant 0 : i32
    return %c0_i32, %c0_i32_0 : i32, i32
  }
}

</mosaic_0001>

<llo_original>
// kernel: tpu_custom_call.1
$region0: #{tpu_custom_call.1}
  #allocation0 [shape = 'u32[]', space=smem, size = 0x4, offset = 0x4, fixed_abs, tag = 'smem constant byte address 0x4 - core index']
  #allocation1 [shape = 'u32[144,128]{1,0:T(1,128)}', space=vmem, size = 0x12000, scoped, tag = 'internal scratch']
  #allocation2 [shape = 'f32[1,1]{1,0:T(1,128)S(1)}', space=vmem, size = 0x200, scoped, tag = 'scoped memory for tpu_custom_call.1']
  %s0 = inlined_call_operand.hbm [shape: f32[300,600], index: 0, kind: input, shape index: {}]
  %s1 = inlined_call_operand.hbm [shape: f32[300,600], index: 1, kind: input, shape index: {}]
  %s2 = inlined_call_operand.vmem [shape: f32[600,10], index: 2, kind: input, shape index: {}]
  %s3 = inlined_call_operand.vmem [shape: f32[600,10], index: 3, kind: input, shape index: {}]
  %s4 = inlined_call_operand.vmem [shape: f32[1,10], index: 4, kind: input, shape index: {}]
  %s5 = inlined_call_operand.vmem [shape: f32[1,10], index: 5, kind: input, shape index: {}]
  %s6 = inlined_call_operand.<no memory space> [shape: f32[1,1], index: 6, kind: input, shape index: {}]
  %s7 = inlined_call_operand.hbm [shape: f32[1,1], index: 7, kind: output, shape index: {0}]
  %s8 = inlined_call_operand.hbm [shape: f32[1,1], index: 8, kind: output, shape index: {1}]
  %s9 = inlined_call_operand.hbm [shape: f32[1,1], index: 9, kind: output, shape index: {2}]
  %10 = xla_tuple %s7, %s8, %s9
  %s11 = sld [smem:[#allocation0]]
  $region89: #{tpu_custom_call.1} parent=0
    _
  %s13 = ssub.s32 1, %s11
  %s14 = scalar_select 0, %s13, %s11
  %v15 = vstv %s6
  %16 = vst [vmem:[#allocation2] sm:$0x1] %v15
  $region1: #{tpu_custom_call.1} parent=0
    #allocation3 [shape = 'u8[655360]{0}', space=vmem, size = 0xa0000, scoped, tag = 'input window, operand 0']
    #allocation4 [shape = 's32[2]{0}', space=sflag, size = 0x8, scoped, tag = 'scoped memory for tpu_custom_call.1']
    #allocation5 [shape = 's32[2]{0}', space=sflag, size = 0x8, scoped, tag = 'scoped memory for tpu_custom_call.1']
    #allocation6 [shape = 'u8[655360]{0}', space=vmem, size = 0xa0000, scoped, tag = 'input window, operand 1']
    #allocation7 [shape = 's32[2]{0}', space=sflag, size = 0x8, scoped, tag = 'scoped memory for tpu_custom_call.1']
    #allocation8 [shape = 'u8[512]{0}', space=vmem, size = 0x400, scoped, tag = 'output window, operand 0, single buffered']
    #allocation9 [shape = 'u8[512]{0}', space=vmem, size = 0x400, scoped, tag = 'output window, operand 1, single buffered']
    #allocation10 [shape = 's32[1]{0}', space=sflag, size = 0x4, scoped, tag = 'scoped memory for tpu_custom_call.1']
    #allocation11 [shape = 'u8[512]{0}', space=vmem, size = 0x400, scoped, tag = 'output window, operand 2, single buffered']
    %17 = vsyncpa [#allocation4], 0
    %s18 = scalar_lea.sflag [#allocation4], 1
    %19 = vsyncpa %s18, 0
    %20 = vsyncpa [#allocation7], 0
    %s21 = scalar_lea.sflag [#allocation7], 1
    %22 = vsyncpa %s21, 0
    %23 = vsyncpa [#allocation5], 0
    %24 = vsyncpa [#allocation10], 0
    loop: start=0, step=1, limit=5
    $region2: #{tpu_custom_call.1} parent=1 // loop_pre_header
      _
    $region3: #{tpu_custom_call.1} parent=1 // loop_header
      %s26 = sphi 0, %s30
      %p27 = scmp.ge.s32.totalorder %s26, 5
      %s36 = sphi 0, %s38
      %s39 = sphi 0, %s36
      %s40 = sphi 0, %s39
      %s56 = sphi 0, %s40
      %s62 = sphi 0, %s64
      %s65 = sphi 0, %s62
      %s66 = sphi 0, %s65
      %s82 = sphi 0, %s66
      %s86 = sphi 0, %s86
      %s88 = sphi 0, %s86
      %s89 = sphi 0, %s88
      %s103 = sphi 0, %s89
      %s107 = sphi 0, %s107
      %s109 = sphi 0, %s107
      %s110 = sphi 0, %s109
      %s124 = sphi 0, %s110
      %s128 = sphi 0, %s128
      %s130 = sphi 0, %s128
      %s131 = sphi 0, %s130
      %s145 = sphi 0, %s131
      %s149 = sphi 0, %s149
      %s151 = sphi 0, %s149
      %s152 = sphi 0, %s151
      %s166 = sphi 0, %s152
      %s170 = sphi 0, %s170
      %s172 = sphi 0, %s170
      %s173 = sphi 0, %s172
      %s187 = sphi 0, %s173
      %s191 = sphi 0, %s191
      %s193 = sphi 0, %s191
      %s194 = sphi 0, %s193
      %s208 = sphi 0, %s194
      %s212 = sphi 0, %s212
      %s214 = sphi 0, %s212
      %s215 = sphi 0, %s214
      %s229 = sphi 0, %s215
      %s233 = sphi 0, %s233
      %s235 = sphi 0, %s233
      %s236 = sphi 0, %s235
      %s250 = sphi 0, %s236
    $region4: #{tpu_custom_call.1} parent=1 // loop_header_branch
      %29 = sbr.rel (%p27) target = $region8
    $region5: #{tpu_custom_call.1} parent=1 // loop_body
      %s31 = ssub.s32 %s26, 1
      %s32 = ssub.s32 %s26, 2
      %s33 = sadd.s32 %s26, 1
      %s34 = ssub.s32 %s26, %s33
      %p35 = scmp.eq.s32.totalorder %s34, 0
      %s37 = sadd.s32 %s36, 1
      %s38 = scalar_select %p35, %s36, %s37
      %p41 = pneg %p35
      %p42 = scmp.eq.s32.totalorder %s26, 2
      %p43 = por %p41, %p42
      %p44 = scmp.ne.s32.totalorder %s36, %s39
      %p45 = scmp.eq.s32.totalorder %s26, 0
      %p46 = por %p44, %p45
      %p47 = scmp.ne.s32.totalorder %s36, %s39
      %p48 = scmp.eq.s32.totalorder %s31, 2
      %p49 = por %p47, %p48
      %p50 = scmp.ne.s32.totalorder %s39, %s40
      %p51 = scmp.eq.s32.totalorder %s31, 0
      %p52 = por %p50, %p51
      %p53 = scmp.ne.s32.totalorder %s39, %s40
      %p54 = scmp.eq.s32.totalorder %s32, 2
      %p55 = por %p53, %p54
      %p57 = scmp.ne.s32.totalorder %s40, %s56
      %p58 = scmp.eq.s32.totalorder %s32, 0
      %p59 = por %p57, %p58
      %s60 = ssub.s32 %s26, %s33
      %p61 = scmp.eq.s32.totalorder %s60, 0
      %s63 = sadd.s32 %s62, 1
      %s64 = scalar_select %p61, %s62, %s63
      %p67 = pneg %p61
      %p68 = scmp.eq.s32.totalorder %s26, 2
      %p69 = por %p67, %p68
      %p70 = scmp.ne.s32.totalorder %s62, %s65
      %p71 = scmp.eq.s32.totalorder %s26, 0
      %p72 = por %p70, %p71
      %p73 = scmp.ne.s32.totalorder %s62, %s65
      %p74 = scmp.eq.s32.totalorder %s31, 2
      %p75 = por %p73, %p74
      %p76 = scmp.ne.s32.totalorder %s65, %s66
      %p77 = scmp.eq.s32.totalorder %s31, 0
      %p78 = por %p76, %p77
      %p79 = scmp.ne.s32.totalorder %s65, %s66
      %p80 = scmp.eq.s32.totalorder %s32, 2
      %p81 = por %p79, %p80
      %p83 = scmp.ne.s32.totalorder %s66, %s82
      %p84 = scmp.eq.s32.totalorder %s32, 0
      %p85 = por %p83, %p84
      %s87 = sadd.s32 %s86, 1
      %p90 = scmp.eq.s32.totalorder %s26, 2
      %p91 = scmp.ne.s32.totalorder %s86, %s88
      %p92 = scmp.eq.s32.totalorder %s26, 0
      %p93 = por %p91, %p92
      %p94 = scmp.ne.s32.totalorder %s86, %s88
      %p95 = scmp.eq.s32.totalorder %s31, 2
      %p96 = por %p94, %p95
      %p97 = scmp.ne.s32.totalorder %s88, %s89
      %p98 = scmp.eq.s32.totalorder %s31, 0
      %p99 = por %p97, %p98
      %p100 = scmp.ne.s32.totalorder %s88, %s89
      %p101 = scmp.eq.s32.totalorder %s32, 2
      %p102 = por %p100, %p101
      %p104 = scmp.ne.s32.totalorder %s89, %s103
      %p105 = scmp.eq.s32.totalorder %s32, 0
      %p106 = por %p104, %p105
      %s108 = sadd.s32 %s107, 1
      %p111 = scmp.eq.s32.totalorder %s26, 2
      %p112 = scmp.ne.s32.totalorder %s107, %s109
      %p113 = scmp.eq.s32.totalorder %s26, 0
      %p114 = por %p112, %p113
      %p115 = scmp.ne.s32.totalorder %s107, %s109
      %p116 = scmp.eq.s32.totalorder %s31, 2
      %p117 = por %p115, %p116
      %p118 = scmp.ne.s32.totalorder %s109, %s110
      %p119 = scmp.eq.s32.totalorder %s31, 0
      %p120 = por %p118, %p119
      %p121 = scmp.ne.s32.totalorder %s109, %s110
      %p122 = scmp.eq.s32.totalorder %s32, 2
      %p123 = por %p121, %p122
      %p125 = scmp.ne.s32.totalorder %s110, %s124
      %p126 = scmp.eq.s32.totalorder %s32, 0
      %p127 = por %p125, %p126
      %s129 = sadd.s32 %s128, 1
      %p132 = scmp.eq.s32.totalorder %s26, 2
      %p133 = scmp.ne.s32.totalorder %s128, %s130
      %p134 = scmp.eq.s32.totalorder %s26, 0
      %p135 = por %p133, %p134
      %p136 = scmp.ne.s32.totalorder %s128, %s130
      %p137 = scmp.eq.s32.totalorder %s31, 2
      %p138 = por %p136, %p137
      %p139 = scmp.ne.s32.totalorder %s130, %s131
      %p140 = scmp.eq.s32.totalorder %s31, 0
      %p141 = por %p139, %p140
      %p142 = scmp.ne.s32.totalorder %s130, %s131
      %p143 = scmp.eq.s32.totalorder %s32, 2
      %p144 = por %p142, %p143
      %p146 = scmp.ne.s32.totalorder %s131, %s145
      %p147 = scmp.eq.s32.totalorder %s32, 0
      %p148 = por %p146, %p147
      %s150 = sadd.s32 %s149, 1
      %p153 = scmp.eq.s32.totalorder %s26, 2
      %p154 = scmp.ne.s32.totalorder %s149, %s151
      %p155 = scmp.eq.s32.totalorder %s26, 0
      %p156 = por %p154, %p155
      %p157 = scmp.ne.s32.totalorder %s149, %s151
      %p158 = scmp.eq.s32.totalorder %s31, 2
      %p159 = por %p157, %p158
      %p160 = scmp.ne.s32.totalorder %s151, %s152
      %p161 = scmp.eq.s32.totalorder %s31, 0
      %p162 = por %p160, %p161
      %p163 = scmp.ne.s32.totalorder %s151, %s152
      %p164 = scmp.eq.s32.totalorder %s32, 2
      %p165 = por %p163, %p164
      %p167 = scmp.ne.s32.totalorder %s152, %s166
      %p168 = scmp.eq.s32.totalorder %s32, 0
      %p169 = por %p167, %p168
      %s171 = sadd.s32 %s170, 1
      %p174 = scmp.eq.s32.totalorder %s26, 2
      %p175 = scmp.ne.s32.totalorder %s170, %s172
      %p176 = scmp.eq.s32.totalorder %s26, 0
      %p177 = por %p175, %p176
      %p178 = scmp.ne.s32.totalorder %s170, %s172
      %p179 = scmp.eq.s32.totalorder %s31, 2
      %p180 = por %p178, %p179
      %p181 = scmp.ne.s32.totalorder %s172, %s173
      %p182 = scmp.eq.s32.totalorder %s31, 0
      %p183 = por %p181, %p182
      %p184 = scmp.ne.s32.totalorder %s172, %s173
      %p185 = scmp.eq.s32.totalorder %s32, 2
      %p186 = por %p184, %p185
      %p188 = scmp.ne.s32.totalorder %s173, %s187
      %p189 = scmp.eq.s32.totalorder %s32, 0
      %p190 = por %p188, %p189
      %s192 = sadd.s32 %s191, 1
      %p195 = scmp.eq.s32.totalorder %s26, 2
      %p196 = scmp.ne.s32.totalorder %s191, %s193
      %p197 = scmp.eq.s32.totalorder %s26, 0
      %p198 = por %p196, %p197
      %p199 = scmp.ne.s32.totalorder %s191, %s193
      %p200 = scmp.eq.s32.totalorder %s31, 2
      %p201 = por %p199, %p200
      %p202 = scmp.ne.s32.totalorder %s193, %s194
      %p203 = scmp.eq.s32.totalorder %s31, 0
      %p204 = por %p202, %p203
      %p205 = scmp.ne.s32.totalorder %s193, %s194
      %p206 = scmp.eq.s32.totalorder %s32, 2
      %p207 = por %p205, %p206
      %p209 = scmp.ne.s32.totalorder %s194, %s208
      %p210 = scmp.eq.s32.totalorder %s32, 0
      %p211 = por %p209, %p210
      %s213 = sadd.s32 %s212, 1
      %p216 = scmp.eq.s32.totalorder %s26, 2
      %p217 = scmp.ne.s32.totalorder %s212, %s214
      %p218 = scmp.eq.s32.totalorder %s26, 0
      %p219 = por %p217, %p218
      %p220 = scmp.ne.s32.totalorder %s212, %s214
      %p221 = scmp.eq.s32.totalorder %s31, 2
      %p222 = por %p220, %p221
      %p223 = scmp.ne.s32.totalorder %s214, %s215
      %p224 = scmp.eq.s32.totalorder %s31, 0
      %p225 = por %p223, %p224
      %p226 = scmp.ne.s32.totalorder %s214, %s215
      %p227 = scmp.eq.s32.totalorder %s32, 2
      %p228 = por %p226, %p227
      %p230 = scmp.ne.s32.totalorder %s215, %s229
      %p231 = scmp.eq.s32.totalorder %s32, 0
      %p232 = por %p230, %p231
      %s234 = sadd.s32 %s233, 1
      %p237 = scmp.eq.s32.totalorder %s26, 2
      %p238 = scmp.ne.s32.totalorder %s233, %s235
      %p239 = scmp.eq.s32.totalorder %s26, 0
      %p240 = por %p238, %p239
      %p241 = scmp.ne.s32.totalorder %s233, %s235
      %p242 = scmp.eq.s32.totalorder %s31, 2
      %p243 = por %p241, %p242
      %p244 = scmp.ne.s32.totalorder %s235, %s236
      %p245 = scmp.eq.s32.totalorder %s31, 0
      %p246 = por %p244, %p245
      %p247 = scmp.ne.s32.totalorder %s235, %s236
      %p248 = scmp.eq.s32.totalorder %s32, 2
      %p249 = por %p247, %p248
      %p251 = scmp.ne.s32.totalorder %s236, %s250
      %p252 = scmp.eq.s32.totalorder %s32, 0
      %p253 = por %p251, %p252
      %p254 = scmp.le.s32.totalorder 1, %s26
      %p255 = scmp.lt.s32.totalorder %s26, 4
      %p256 = pnand %p254, %p255
      %p257 = pneg %p256
      // Predicated region
      $region9: #{tpu_custom_call.1} parent=5 // pred_check
        _
      $region10: #{tpu_custom_call.1} parent=5 // pred_check_branch
        %259 = sbr.rel (%p256) target = $region12
      $region11: #{tpu_custom_call.1} parent=5 // pred_region
        %s260 = ssub.s32 %s26, 1
        // Predicated region
        $region13: #{tpu_custom_call.1} parent=11 // pred_check
          %p261 = pneg %p99
        $region14: #{tpu_custom_call.1} parent=11 // pred_check_branch
          %263 = sbr.rel (%p261) target = $region16
        $region15: #{tpu_custom_call.1} parent=11 // pred_region
          _
        $region16: #{tpu_custom_call.1} parent=11 // pred_fallthru
          _
        // Predicated region
        $region17: #{tpu_custom_call.1} parent=11 // pred_check
          %p264 = pneg %p120
        $region18: #{tpu_custom_call.1} parent=11 // pred_check_branch
          %266 = sbr.rel (%p264) target = $region20
        $region19: #{tpu_custom_call.1} parent=11 // pred_region
          _
        $region20: #{tpu_custom_call.1} parent=11 // pred_fallthru
          _
        // Predicated region
        $region21: #{tpu_custom_call.1} parent=11 // pred_check
          %p267 = pneg %p141
        $region22: #{tpu_custom_call.1} parent=11 // pred_check_branch
          %269 = sbr.rel (%p267) target = $region24
        $region23: #{tpu_custom_call.1} parent=11 // pred_region
          _
        $region24: #{tpu_custom_call.1} parent=11 // pred_fallthru
          _
        // Predicated region
        $region25: #{tpu_custom_call.1} parent=11 // pred_check
          %p270 = pneg %p162
        $region26: #{tpu_custom_call.1} parent=11 // pred_check_branch
          %272 = sbr.rel (%p270) target = $region28
        $region27: #{tpu_custom_call.1} parent=11 // pred_region
          _
        $region28: #{tpu_custom_call.1} parent=11 // pred_fallthru
          _
        // Predicated region
        $region29: #{tpu_custom_call.1} parent=11 // pred_check
          %p273 = pneg %p183
        $region30: #{tpu_custom_call.1} parent=11 // pred_check_branch
          %275 = sbr.rel (%p273) target = $region32
        $region31: #{tpu_custom_call.1} parent=11 // pred_region
          _
        $region32: #{tpu_custom_call.1} parent=11 // pred_fallthru
          _
      $region12: #{tpu_custom_call.1} parent=5 // pred_fallthru
        _
      %p276 = scmp.lt.s32.totalorder %s26, 3
      // Predicated region
      $region33: #{tpu_custom_call.1} parent=5 // pred_check
        %p277 = pneg %p276
      $region34: #{tpu_custom_call.1} parent=5 // pred_check_branch
        %279 = sbr.rel (%p277) target = $region36
      $region35: #{tpu_custom_call.1} parent=5 // pred_region
        // Predicated region
        $region37: #{tpu_custom_call.1} parent=35 // pred_check
          %p280 = pneg %p46
        $region38: #{tpu_custom_call.1} parent=35 // pred_check_branch
          %282 = sbr.rel (%p280) target = $region40
        $region39: #{tpu_custom_call.1} parent=35 // pred_region
          %s283 = sand.u32 %s36, 1
          %s284 = scalar_lea.sflag [#allocation4], %s283
          %s285 = sand.u32 %s36, 1
          %s286 = smul.addr %s285, 640
          %s287 = scalar_lea.vmem [#allocation3], %s286
          %s288 = smul.u32 16, %s26
          %s289 = ssub.s32 38, %s288
          %p290 = scmp.lt.s32.totalorder %s289, 16
          %s291 = scalar_select %p290, %s289, 16
          %s292 = smul.u32 128, %s291
          %s293 = smul.u32 %s292, 5
          %s295 = ssub.s32 10240, %s293
          %296 = vsyncadd %s284, %s295
          %p297 = scmp.ne.s32.totalorder 0, %s293
          %s298 = smul.addr %s288, 5
          %s299 = smul.addr %s298, 128
          %s300 = scalar_lea.hbm %s0, %s299
          %s301 = smul.u32 40, %s291
          %s302 = sshll.u32 %s287, 4
          %s303 = int_to_ptr.vmem [resolvable:$true] %s302
          %s304 = sshll.u32 %s301, 4
          %308 = dma.hbm_to_vmem [thread:$0]  (%p297), %s300, %s304, %s303, %s284, 640, 640, 40
        $region40: #{tpu_custom_call.1} parent=35 // pred_fallthru
          _
        // Predicated region
        $region41: #{tpu_custom_call.1} parent=35 // pred_check
          %p309 = pneg %p72
        $region42: #{tpu_custom_call.1} parent=35 // pred_check_branch
          %311 = sbr.rel (%p309) target = $region44
        $region43: #{tpu_custom_call.1} parent=35 // pred_region
          %s312 = sand.u32 %s62, 1
          %s313 = scalar_lea.sflag [#allocation7], %s312
          %s314 = sand.u32 %s62, 1
          %s315 = smul.addr %s314, 640
          %s316 = scalar_lea.vmem [#allocation6], %s315
          %s317 = smul.u32 16, %s26
          %s318 = ssub.s32 38, %s317
          %p319 = scmp.lt.s32.totalorder %s318, 16
          %s320 = scalar_select %p319, %s318, 16
          %s321 = smul.u32 128, %s320
          %s322 = smul.u32 %s321, 5
          %s324 = ssub.s32 10240, %s322
          %325 = vsyncadd %s313, %s324
          %p326 = scmp.ne.s32.totalorder 0, %s322
          %s327 = smul.addr %s317, 5
          %s328 = smul.addr %s327, 128
          %s329 = scalar_lea.hbm %s1, %s328
          %s330 = smul.u32 40, %s320
          %s331 = sshll.u32 %s316, 4
          %s332 = int_to_ptr.vmem [resolvable:$true] %s331
          %s333 = sshll.u32 %s330, 4
          %337 = dma.hbm_to_vmem [thread:$0]  (%p326), %s329, %s333, %s332, %s313, 640, 640, 40
        $region44: #{tpu_custom_call.1} parent=35 // pred_fallthru
          _
      $region36: #{tpu_custom_call.1} parent=5 // pred_fallthru
        _
      %p338 = scmp.le.s32.totalorder 1, %s26
      %p339 = scmp.lt.s32.totalorder %s26, 4
      %p340 = pnand %p338, %p339
      %p341 = pneg %p340
      // Predicated region
      $region45: #{tpu_custom_call.1} parent=5 // pred_check
        _
      $region46: #{tpu_custom_call.1} parent=5 // pred_check_branch
        %343 = sbr.rel (%p340) target = $region48
      $region47: #{tpu_custom_call.1} parent=5 // pred_region
        %s344 = ssub.s32 %s26, 1
        %s345 = sand.u32 %s39, 1
        %s346 = scalar_lea.sflag [#allocation4], %s345
        %s347 = sand.u32 %s39, 1
        %s348 = smul.addr %s347, 640
        %s349 = scalar_lea.vmem [#allocation3], %s348
        // Predicated region
        $region49: #{tpu_custom_call.1} parent=47 // pred_check
          %p350 = pneg %p52
        $region50: #{tpu_custom_call.1} parent=47 // pred_check_branch
          %352 = sbr.rel (%p350) target = $region52
        $region51: #{tpu_custom_call.1} parent=47 // pred_region
          %353 = dma.done %s346, 10240
        $region52: #{tpu_custom_call.1} parent=47 // pred_fallthru
          _
        %s354 = sand.u32 %s65, 1
        %s355 = scalar_lea.sflag [#allocation7], %s354
        %s356 = sand.u32 %s65, 1
        %s357 = smul.addr %s356, 640
        %s358 = scalar_lea.vmem [#allocation6], %s357
        // Predicated region
        $region53: #{tpu_custom_call.1} parent=47 // pred_check
          %p359 = pneg %p78
        $region54: #{tpu_custom_call.1} parent=47 // pred_check_branch
          %361 = sbr.rel (%p359) target = $region56
        $region55: #{tpu_custom_call.1} parent=47 // pred_region
          %362 = dma.done %s355, 10240
        $region56: #{tpu_custom_call.1} parent=47 // pred_fallthru
          _
        %s363 = sand.u32 %s39, 1
        %s364 = scalar_lea.sflag [#allocation4], %s363
        %s365 = sand.u32 %s39, 1
        %s366 = smul.addr %s365, 640
        %s367 = scalar_lea.vmem [#allocation3], %s366
        %p368 = pneg %p52
        %p369 = pneg %p49
        %s370 = sand.u32 %s65, 1
        %s371 = scalar_lea.sflag [#allocation7], %s370
        %s372 = sand.u32 %s65, 1
        %s373 = smul.addr %s372, 640
        %s374 = scalar_lea.vmem [#allocation6], %s373
        %p375 = pneg %p78
        %p376 = pneg %p75
        %p377 = pneg %p99
        %p378 = pneg %p96
        %p379 = pneg %p120
        %p380 = pneg %p117
        %p381 = pneg %p141
        %p382 = pneg %p138
        %p383 = pneg %p162
        %p384 = pneg %p159
        %p385 = pneg %p183
        %p386 = pneg %p180
        %p387 = pneg %p204
        %p388 = pneg %p201
        %p389 = pneg %p225
        %p390 = pneg %p222
        %p391 = pneg %p246
        %p392 = pneg %p243
        %s393 = smul.u32 16, %s31
        %s394 = ssub.s32 38, %s393
        %p395 = scmp.lt.s32.totalorder %s394, 16
        %s396 = scalar_select %p395, %s394, 16
        %s397 = smul.u32 128, %s396
        %s398 = smul.u32 %s397, 5
        %s399 = smul.u32 16, %s31
        %s400 = ssub.s32 38, %s399
        %p401 = scmp.lt.s32.totalorder %s400, 16
        %s402 = scalar_select %p401, %s400, 16
        %s403 = smul.u32 128, %s402
        %s404 = smul.u32 %s403, 5
        %p405 = scmp.eq.s32.totalorder %s31, 0
        // Predicated region
        $region57: #{tpu_custom_call.1} parent=47 // pred_check
          %p406 = pneg %p405
        $region58: #{tpu_custom_call.1} parent=47 // pred_check_branch
          %408 = sbr.rel (%p406) target = $region60
        $region59: #{tpu_custom_call.1} parent=47 // pred_region
          %vm409 = vcmask 0
          %410 = vst.msk [vmem:[#allocation8] sm:$0x1] %vm409, 0.0
          %411 = vst.msk [vmem:[#allocation9] sm:$0x1] %vm409, -inf
          %412 = vst.msk [vmem:[#allocation11] sm:$0x1] %vm409, 0.0
        $region60: #{tpu_custom_call.1} parent=47 // pred_fallthru
          _
        %v413 = vld [vmem:[%s349] sm:$0xff]
        %v414 = vld [vmem:[%s349 + $0x8] sm:$0xff]
        %v415 = vld [vmem:[%s349 + $0x10] sm:$0xff]
        %v416 = vld [vmem:[%s349 + $0x18] sm:$0xff]
        %v417 = vld [vmem:[%s349 + $0x20] sm:$0xff]
        %v418 = vld [vmem:[%s349 + $0x28] sm:$0xff]
        %v419 = vld [vmem:[%s349 + $0x30] sm:$0xff]
        %v420 = vld [vmem:[%s349 + $0x38] sm:$0xff]
        %v421 = vld [vmem:[%s349 + $0x40] sm:$0xff]
        %v422 = vld [vmem:[%s349 + $0x48] sm:$0xff]
        %v423 = vld [vmem:[%s349 + $0x50] sm:$0xff]
        %v424 = vld [vmem:[%s349 + $0x58] sm:$0xff]
        %v425 = vld [vmem:[%s349 + $0x60] sm:$0xff]
        %v426 = vld [vmem:[%s349 + $0x68] sm:$0xff]
        %v427 = vld [vmem:[%s349 + $0x70] sm:$0xff]
        %v428 = vld [vmem:[%s349 + $0x78] sm:$0xff]
        %v429 = vld [vmem:[%s349 + $0x80] sm:$0xff]
        %v430 = vld [vmem:[%s349 + $0x88] sm:$0xff]
        %v431 = vld [vmem:[%s349 + $0x90] sm:$0xff]
        %v432 = vld [vmem:[%s349 + $0x98] sm:$0xff]
        %v433 = vld [vmem:[%s349 + $0xa0] sm:$0xff]
        %v434 = vld [vmem:[%s349 + $0xa8] sm:$0xff]
        %v435 = vld [vmem:[%s349 + $0xb0] sm:$0xff]
        %v436 = vld [vmem:[%s349 + $0xb8] sm:$0xff]
        %v437 = vld [vmem:[%s349 + $0xc0] sm:$0xff]
        %v438 = vld [vmem:[%s349 + $0xc8] sm:$0xff]
        %v439 = vld [vmem:[%s349 + $0xd0] sm:$0xff]
        %v440 = vld [vmem:[%s349 + $0xd8] sm:$0xff]
        %v441 = vld [vmem:[%s349 + $0xe0] sm:$0xff]
        %v442 = vld [vmem:[%s349 + $0xe8] sm:$0xff]
        %v443 = vld [vmem:[%s349 + $0xf0] sm:$0xff]
        %v444 = vld [vmem:[%s349 + $0xf8] sm:$0xff]
        %v445 = vld [vmem:[%s349 + $0x100] sm:$0xff]
        %v446 = vld [vmem:[%s349 + $0x108] sm:$0xff]
        %v447 = vld [vmem:[%s349 + $0x110] sm:$0xff]
        %v448 = vld [vmem:[%s349 + $0x118] sm:$0xff]
        %v449 = vld [vmem:[%s349 + $0x120] sm:$0xff]
        %v450 = vld [vmem:[%s349 + $0x128] sm:$0xff]
        %v451 = vld [vmem:[%s349 + $0x130] sm:$0xff]
        %v452 = vld [vmem:[%s349 + $0x138] sm:$0xff]
        %v453 = vld [vmem:[%s349 + $0x140] sm:$0xff]
        %v454 = vld [vmem:[%s349 + $0x148] sm:$0xff]
        %v455 = vld [vmem:[%s349 + $0x150] sm:$0xff]
        %v456 = vld [vmem:[%s349 + $0x158] sm:$0xff]
        %v457 = vld [vmem:[%s349 + $0x160] sm:$0xff]
        %v458 = vld [vmem:[%s349 + $0x168] sm:$0xff]
        %v459 = vld [vmem:[%s349 + $0x170] sm:$0xff]
        %v460 = vld [vmem:[%s349 + $0x178] sm:$0xff]
        %v461 = vld [vmem:[%s349 + $0x180] sm:$0xff]
        %v462 = vld [vmem:[%s349 + $0x188] sm:$0xff]
        %v463 = vld [vmem:[%s349 + $0x190] sm:$0xff]
        %v464 = vld [vmem:[%s349 + $0x198] sm:$0xff]
        %v465 = vld [vmem:[%s349 + $0x1a0] sm:$0xff]
        %v466 = vld [vmem:[%s349 + $0x1a8] sm:$0xff]
        %v467 = vld [vmem:[%s349 + $0x1b0] sm:$0xff]
        %v468 = vld [vmem:[%s349 + $0x1b8] sm:$0xff]
        %v469 = vld [vmem:[%s349 + $0x1c0] sm:$0xff]
        %v470 = vld [vmem:[%s349 + $0x1c8] sm:$0xff]
        %v471 = vld [vmem:[%s349 + $0x1d0] sm:$0xff]
        %v472 = vld [vmem:[%s349 + $0x1d8] sm:$0xff]
        %v473 = vld [vmem:[%s349 + $0x1e0] sm:$0xff]
        %v474 = vld [vmem:[%s349 + $0x1e8] sm:$0xff]
        %v475 = vld [vmem:[%s349 + $0x1f0] sm:$0xff]
        %v476 = vld [vmem:[%s349 + $0x1f8] sm:$0xff]
        %v477 = vld [vmem:[%s349 + $0x200] sm:$0xff]
        %v478 = vld [vmem:[%s349 + $0x208] sm:$0xff]
        %v479 = vld [vmem:[%s349 + $0x210] sm:$0xff]
        %v480 = vld [vmem:[%s349 + $0x218] sm:$0xff]
        %v481 = vld [vmem:[%s349 + $0x220] sm:$0xff]
        %v482 = vld [vmem:[%s349 + $0x228] sm:$0xff]
        %v483 = vld [vmem:[%s349 + $0x230] sm:$0xff]
        %v484 = vld [vmem:[%s349 + $0x238] sm:$0xff]
        %v485 = vld [vmem:[%s349 + $0x240] sm:$0xff]
        %v486 = vld [vmem:[%s349 + $0x248] sm:$0xff]
        %v487 = vld [vmem:[%s349 + $0x250] sm:$0xff]
        %v488 = vld [vmem:[%s349 + $0x258] sm:$0xff]
        %v489 = vld [vmem:[%s349 + $0x260] sm:$0xff]
        %v490 = vld [vmem:[%s349 + $0x268] sm:$0xff]
        %v491 = vld [vmem:[%s349 + $0x270] sm:$0xff]
        %v492 = vld [vmem:[%s349 + $0x278] sm:$0xff]
        %v493 = vld [vmem:[%s2] sm:$0xff]
        %v494 = vld [vmem:[%s2 + $0x8] sm:$0xff]
        %v495 = vld [vmem:[%s2 + $0x10] sm:$0xff]
        %v496 = vld [vmem:[%s2 + $0x18] sm:$0xff]
        %v497 = vld [vmem:[%s2 + $0x20] sm:$0xff]
        %v498 = vld [vmem:[%s2 + $0x28] sm:$0xff]
        %v499 = vld [vmem:[%s2 + $0x30] sm:$0xff]
        %v500 = vld [vmem:[%s2 + $0x38] sm:$0xff]
        %v501 = vld [vmem:[%s2 + $0x40] sm:$0xff]
        %v502 = vld [vmem:[%s2 + $0x48] sm:$0xff]
        %v503 = vld [vmem:[%s2 + $0x50] sm:$0xff]
        %v504 = vld [vmem:[%s2 + $0x58] sm:$0xff]
        %v505 = vld [vmem:[%s2 + $0x60] sm:$0xff]
        %v506 = vld [vmem:[%s2 + $0x68] sm:$0xff]
        %v507 = vld [vmem:[%s2 + $0x70] sm:$0xff]
        %v508 = vld [vmem:[%s2 + $0x78] sm:$0xff]
        %v509 = vld [vmem:[%s2 + $0x80] sm:$0xff]
        %v510 = vld [vmem:[%s2 + $0x88] sm:$0xff]
        %v511 = vld [vmem:[%s2 + $0x90] sm:$0xff]
        %v512 = vld [vmem:[%s2 + $0x98] sm:$0xff]
        %v513 = vld [vmem:[%s2 + $0xa0] sm:$0xff]
        %v514 = vld [vmem:[%s2 + $0xa8] sm:$0xff]
        %v515 = vld [vmem:[%s2 + $0xb0] sm:$0xff]
        %v516 = vld [vmem:[%s2 + $0xb8] sm:$0xff]
        %v517 = vld [vmem:[%s2 + $0xc0] sm:$0xff]
        %v518 = vld [vmem:[%s2 + $0xc8] sm:$0xff]
        %v519 = vld [vmem:[%s2 + $0xd0] sm:$0xff]
        %v520 = vld [vmem:[%s2 + $0xd8] sm:$0xff]
        %v521 = vld [vmem:[%s2 + $0xe0] sm:$0xff]
        %v522 = vld [vmem:[%s2 + $0xe8] sm:$0xff]
        %v523 = vld [vmem:[%s2 + $0xf0] sm:$0xff]
        %v524 = vld [vmem:[%s2 + $0xf8] sm:$0xff]
        %v525 = vld [vmem:[%s2 + $0x100] sm:$0xff]
        %v526 = vld [vmem:[%s2 + $0x108] sm:$0xff]
        %v527 = vld [vmem:[%s2 + $0x110] sm:$0xff]
        %v528 = vld [vmem:[%s2 + $0x118] sm:$0xff]
        %v529 = vld [vmem:[%s2 + $0x120] sm:$0xff]
        %v530 = vld [vmem:[%s2 + $0x128] sm:$0xff]
        %v531 = vld [vmem:[%s2 + $0x130] sm:$0xff]
        %v532 = vld [vmem:[%s2 + $0x138] sm:$0xff]
        %v533 = vld [vmem:[%s2 + $0x140] sm:$0xff]
        %v534 = vld [vmem:[%s2 + $0x148] sm:$0xff]
        %v535 = vld [vmem:[%s2 + $0x150] sm:$0xff]
        %v536 = vld [vmem:[%s2 + $0x158] sm:$0xff]
        %v537 = vld [vmem:[%s2 + $0x160] sm:$0xff]
        %v538 = vld [vmem:[%s2 + $0x168] sm:$0xff]
        %v539 = vld [vmem:[%s2 + $0x170] sm:$0xff]
        %v540 = vld [vmem:[%s2 + $0x178] sm:$0xff]
        %v541 = vld [vmem:[%s2 + $0x180] sm:$0xff]
        %v542 = vld [vmem:[%s2 + $0x188] sm:$0xff]
        %v543 = vld [vmem:[%s2 + $0x190] sm:$0xff]
        %v544 = vld [vmem:[%s2 + $0x198] sm:$0xff]
        %v545 = vld [vmem:[%s2 + $0x1a0] sm:$0xff]
        %v546 = vld [vmem:[%s2 + $0x1a8] sm:$0xff]
        %v547 = vld [vmem:[%s2 + $0x1b0] sm:$0xff]
        %v548 = vld [vmem:[%s2 + $0x1b8] sm:$0xff]
        %v549 = vld [vmem:[%s2 + $0x1c0] sm:$0xff]
        %v550 = vld [vmem:[%s2 + $0x1c8] sm:$0xff]
        %v551 = vld [vmem:[%s2 + $0x1d0] sm:$0xff]
        %v552 = vld [vmem:[%s2 + $0x1d8] sm:$0xff]
        %v553 = vld [vmem:[%s2 + $0x1e0] sm:$0xff]
        %v554 = vld [vmem:[%s2 + $0x1e8] sm:$0xff]
        %v555 = vld [vmem:[%s2 + $0x1f0] sm:$0xff]
        %v556 = vld [vmem:[%s2 + $0x1f8] sm:$0xff]
        %v557 = vld [vmem:[%s2 + $0x200] sm:$0xff]
        %v558 = vld [vmem:[%s2 + $0x208] sm:$0xff]
        %v559 = vld [vmem:[%s2 + $0x210] sm:$0xff]
        %v560 = vld [vmem:[%s2 + $0x218] sm:$0xff]
        %v561 = vld [vmem:[%s2 + $0x220] sm:$0xff]
        %v562 = vld [vmem:[%s2 + $0x228] sm:$0xff]
        %v563 = vld [vmem:[%s2 + $0x230] sm:$0xff]
        %v564 = vld [vmem:[%s2 + $0x238] sm:$0xff]
        %v565 = vld [vmem:[%s2 + $0x240] sm:$0xff]
        %v566 = vld [vmem:[%s2 + $0x248] sm:$0xff]
        %v567 = vld [vmem:[%s2 + $0x250] sm:$0xff]
        %v568 = vld [vmem:[%s358] sm:$0xff]
        %v569 = vld [vmem:[%s358 + $0x8] sm:$0xff]
        %v570 = vld [vmem:[%s358 + $0x10] sm:$0xff]
        %v571 = vld [vmem:[%s358 + $0x18] sm:$0xff]
        %v572 = vld [vmem:[%s358 + $0x20] sm:$0xff]
        %v573 = vld [vmem:[%s358 + $0x28] sm:$0xff]
        %v574 = vld [vmem:[%s358 + $0x30] sm:$0xff]
        %v575 = vld [vmem:[%s358 + $0x38] sm:$0xff]
        %v576 = vld [vmem:[%s358 + $0x40] sm:$0xff]
        %v577 = vld [vmem:[%s358 + $0x48] sm:$0xff]
        %v578 = vld [vmem:[%s358 + $0x50] sm:$0xff]
        %v579 = vld [vmem:[%s358 + $0x58] sm:$0xff]
        %v580 = vld [vmem:[%s358 + $0x60] sm:$0xff]
        %v581 = vld [vmem:[%s358 + $0x68] sm:$0xff]
        %v582 = vld [vmem:[%s358 + $0x70] sm:$0xff]
        %v583 = vld [vmem:[%s358 + $0x78] sm:$0xff]
        %v584 = vld [vmem:[%s358 + $0x80] sm:$0xff]
        %v585 = vld [vmem:[%s358 + $0x88] sm:$0xff]
        %v586 = vld [vmem:[%s358 + $0x90] sm:$0xff]
        %v587 = vld [vmem:[%s358 + $0x98] sm:$0xff]
        %v588 = vld [vmem:[%s358 + $0xa0] sm:$0xff]
        %v589 = vld [vmem:[%s358 + $0xa8] sm:$0xff]
        %v590 = vld [vmem:[%s358 + $0xb0] sm:$0xff]
        %v591 = vld [vmem:[%s358 + $0xb8] sm:$0xff]
        %v592 = vld [vmem:[%s358 + $0xc0] sm:$0xff]
        %v593 = vld [vmem:[%s358 + $0xc8] sm:$0xff]
        %v594 = vld [vmem:[%s358 + $0xd0] sm:$0xff]
        %v595 = vld [vmem:[%s358 + $0xd8] sm:$0xff]
        %v596 = vld [vmem:[%s358 + $0xe0] sm:$0xff]
        %v597 = vld [vmem:[%s358 + $0xe8] sm:$0xff]
        %v598 = vld [vmem:[%s358 + $0xf0] sm:$0xff]
        %v599 = vld [vmem:[%s358 + $0xf8] sm:$0xff]
        %v600 = vld [vmem:[%s358 + $0x100] sm:$0xff]
        %v601 = vld [vmem:[%s358 + $0x108] sm:$0xff]
        %v602 = vld [vmem:[%s358 + $0x110] sm:$0xff]
        %v603 = vld [vmem:[%s358 + $0x118] sm:$0xff]
        %v604 = vld [vmem:[%s358 + $0x120] sm:$0xff]
        %v605 = vld [vmem:[%s358 + $0x128] sm:$0xff]
        %v606 = vld [vmem:[%s358 + $0x130] sm:$0xff]
        %v607 = vld [vmem:[%s358 + $0x138] sm:$0xff]
        %v608 = vld [vmem:[%s358 + $0x140] sm:$0xff]
        %v609 = vld [vmem:[%s358 + $0x148] sm:$0xff]
        %v610 = vld [vmem:[%s358 + $0x150] sm:$0xff]
        %v611 = vld [vmem:[%s358 + $0x158] sm:$0xff]
        %v612 = vld [vmem:[%s358 + $0x160] sm:$0xff]
        %v613 = vld [vmem:[%s358 + $0x168] sm:$0xff]
        %v614 = vld [vmem:[%s358 + $0x170] sm:$0xff]
        %v615 = vld [vmem:[%s358 + $0x178] sm:$0xff]
        %v616 = vld [vmem:[%s358 + $0x180] sm:$0xff]
        %v617 = vld [vmem:[%s358 + $0x188] sm:$0xff]
        %v618 = vld [vmem:[%s358 + $0x190] sm:$0xff]
        %v619 = vld [vmem:[%s358 + $0x198] sm:$0xff]
        %v620 = vld [vmem:[%s358 + $0x1a0] sm:$0xff]
        %v621 = vld [vmem:[%s358 + $0x1a8] sm:$0xff]
        %v622 = vld [vmem:[%s358 + $0x1b0] sm:$0xff]
        %v623 = vld [vmem:[%s358 + $0x1b8] sm:$0xff]
        %v624 = vld [vmem:[%s358 + $0x1c0] sm:$0xff]
        %v625 = vld [vmem:[%s358 + $0x1c8] sm:$0xff]
        %v626 = vld [vmem:[%s358 + $0x1d0] sm:$0xff]
        %v627 = vld [vmem:[%s358 + $0x1d8] sm:$0xff]
        %v628 = vld [vmem:[%s358 + $0x1e0] sm:$0xff]
        %v629 = vld [vmem:[%s358 + $0x1e8] sm:$0xff]
        %v630 = vld [vmem:[%s358 + $0x1f0] sm:$0xff]
        %v631 = vld [vmem:[%s358 + $0x1f8] sm:$0xff]
        %v632 = vld [vmem:[%s358 + $0x200] sm:$0xff]
        %v633 = vld [vmem:[%s358 + $0x208] sm:$0xff]
        %v634 = vld [vmem:[%s358 + $0x210] sm:$0xff]
        %v635 = vld [vmem:[%s358 + $0x218] sm:$0xff]
        %v636 = vld [vmem:[%s358 + $0x220] sm:$0xff]
        %v637 = vld [vmem:[%s358 + $0x228] sm:$0xff]
        %v638 = vld [vmem:[%s358 + $0x230] sm:$0xff]
        %v639 = vld [vmem:[%s358 + $0x238] sm:$0xff]
        %v640 = vld [vmem:[%s358 + $0x240] sm:$0xff]
        %v641 = vld [vmem:[%s358 + $0x248] sm:$0xff]
        %v642 = vld [vmem:[%s358 + $0x250] sm:$0xff]
        %v643 = vld [vmem:[%s358 + $0x258] sm:$0xff]
        %v644 = vld [vmem:[%s358 + $0x260] sm:$0xff]
        %v645 = vld [vmem:[%s358 + $0x268] sm:$0xff]
        %v646 = vld [vmem:[%s358 + $0x270] sm:$0xff]
        %v647 = vld [vmem:[%s358 + $0x278] sm:$0xff]
        %v648 = vld [vmem:[%s3] sm:$0xff]
        %v649 = vld [vmem:[%s3 + $0x8] sm:$0xff]
        %v650 = vld [vmem:[%s3 + $0x10] sm:$0xff]
        %v651 = vld [vmem:[%s3 + $0x18] sm:$0xff]
        %v652 = vld [vmem:[%s3 + $0x20] sm:$0xff]
        %v653 = vld [vmem:[%s3 + $0x28] sm:$0xff]
        %v654 = vld [vmem:[%s3 + $0x30] sm:$0xff]
        %v655 = vld [vmem:[%s3 + $0x38] sm:$0xff]
        %v656 = vld [vmem:[%s3 + $0x40] sm:$0xff]
        %v657 = vld [vmem:[%s3 + $0x48] sm:$0xff]
        %v658 = vld [vmem:[%s3 + $0x50] sm:$0xff]
        %v659 = vld [vmem:[%s3 + $0x58] sm:$0xff]
        %v660 = vld [vmem:[%s3 + $0x60] sm:$0xff]
        %v661 = vld [vmem:[%s3 + $0x68] sm:$0xff]
        %v662 = vld [vmem:[%s3 + $0x70] sm:$0xff]
        %v663 = vld [vmem:[%s3 + $0x78] sm:$0xff]
        %v664 = vld [vmem:[%s3 + $0x80] sm:$0xff]
        %v665 = vld [vmem:[%s3 + $0x88] sm:$0xff]
        %v666 = vld [vmem:[%s3 + $0x90] sm:$0xff]
        %v667 = vld [vmem:[%s3 + $0x98] sm:$0xff]
        %v668 = vld [vmem:[%s3 + $0xa0] sm:$0xff]
        %v669 = vld [vmem:[%s3 + $0xa8] sm:$0xff]
        %v670 = vld [vmem:[%s3 + $0xb0] sm:$0xff]
        %v671 = vld [vmem:[%s3 + $0xb8] sm:$0xff]
        %v672 = vld [vmem:[%s3 + $0xc0] sm:$0xff]
        %v673 = vld [vmem:[%s3 + $0xc8] sm:$0xff]
        %v674 = vld [vmem:[%s3 + $0xd0] sm:$0xff]
        %v675 = vld [vmem:[%s3 + $0xd8] sm:$0xff]
        %v676 = vld [vmem:[%s3 + $0xe0] sm:$0xff]
        %v677 = vld [vmem:[%s3 + $0xe8] sm:$0xff]
        %v678 = vld [vmem:[%s3 + $0xf0] sm:$0xff]
        %v679 = vld [vmem:[%s3 + $0xf8] sm:$0xff]
        %v680 = vld [vmem:[%s3 + $0x100] sm:$0xff]
        %v681 = vld [vmem:[%s3 + $0x108] sm:$0xff]
        %v682 = vld [vmem:[%s3 + $0x110] sm:$0xff]
        %v683 = vld [vmem:[%s3 + $0x118] sm:$0xff]
        %v684 = vld [vmem:[%s3 + $0x120] sm:$0xff]
        %v685 = vld [vmem:[%s3 + $0x128] sm:$0xff]
        %v686 = vld [vmem:[%s3 + $0x130] sm:$0xff]
        %v687 = vld [vmem:[%s3 + $0x138] sm:$0xff]
        %v688 = vld [vmem:[%s3 + $0x140] sm:$0xff]
        %v689 = vld [vmem:[%s3 + $0x148] sm:$0xff]
        %v690 = vld [vmem:[%s3 + $0x150] sm:$0xff]
        %v691 = vld [vmem:[%s3 + $0x158] sm:$0xff]
        %v692 = vld [vmem:[%s3 + $0x160] sm:$0xff]
        %v693 = vld [vmem:[%s3 + $0x168] sm:$0xff]
        %v694 = vld [vmem:[%s3 + $0x170] sm:$0xff]
        %v695 = vld [vmem:[%s3 + $0x178] sm:$0xff]
        %v696 = vld [vmem:[%s3 + $0x180] sm:$0xff]
        %v697 = vld [vmem:[%s3 + $0x188] sm:$0xff]
        %v698 = vld [vmem:[%s3 + $0x190] sm:$0xff]
        %v699 = vld [vmem:[%s3 + $0x198] sm:$0xff]
        %v700 = vld [vmem:[%s3 + $0x1a0] sm:$0xff]
        %v701 = vld [vmem:[%s3 + $0x1a8] sm:$0xff]
        %v702 = vld [vmem:[%s3 + $0x1b0] sm:$0xff]
        %v703 = vld [vmem:[%s3 + $0x1b8] sm:$0xff]
        %v704 = vld [vmem:[%s3 + $0x1c0] sm:$0xff]
        %v705 = vld [vmem:[%s3 + $0x1c8] sm:$0xff]
        %v706 = vld [vmem:[%s3 + $0x1d0] sm:$0xff]
        %v707 = vld [vmem:[%s3 + $0x1d8] sm:$0xff]
        %v708 = vld [vmem:[%s3 + $0x1e0] sm:$0xff]
        %v709 = vld [vmem:[%s3 + $0x1e8] sm:$0xff]
        %v710 = vld [vmem:[%s3 + $0x1f0] sm:$0xff]
        %v711 = vld [vmem:[%s3 + $0x1f8] sm:$0xff]
        %v712 = vld [vmem:[%s3 + $0x200] sm:$0xff]
        %v713 = vld [vmem:[%s3 + $0x208] sm:$0xff]
        %v714 = vld [vmem:[%s3 + $0x210] sm:$0xff]
        %v715 = vld [vmem:[%s3 + $0x218] sm:$0xff]
        %v716 = vld [vmem:[%s3 + $0x220] sm:$0xff]
        %v717 = vld [vmem:[%s3 + $0x228] sm:$0xff]
        %v718 = vld [vmem:[%s3 + $0x230] sm:$0xff]
        %v719 = vld [vmem:[%s3 + $0x238] sm:$0xff]
        %v720 = vld [vmem:[%s3 + $0x240] sm:$0xff]
        %v721 = vld [vmem:[%s3 + $0x248] sm:$0xff]
        %v722 = vld [vmem:[%s3 + $0x250] sm:$0xff]
        %vm723 = vcmask 719872
        %v725 = vsel %vm723, %v572, 0
        %v728 = vsel %vm723, %v577, 0
        %v731 = vsel %vm723, %v582, 0
        %v734 = vsel %vm723, %v587, 0
        %v737 = vsel %vm723, %v592, 0
        %v740 = vsel %vm723, %v597, 0
        %v743 = vsel %vm723, %v602, 0
        %v746 = vsel %vm723, %v607, 0
        %v749 = vsel %vm723, %v612, 0
        %v752 = vsel %vm723, %v617, 0
        %v755 = vsel %vm723, %v622, 0
        %v758 = vsel %vm723, %v627, 0
        %v761 = vsel %vm723, %v632, 0
        %v764 = vsel %vm723, %v637, 0
        %v767 = vsel %vm723, %v642, 0
        %v770 = vsel %vm723, %v647, 0
        %772 = vmatprep.subr.mxu0 0.0
        %773 = vmatpush1.msra.mxu0 %v663
        %774 = vmatprep.subr.mxu0 0.0
        %775 = vmatpush1.msra.mxu0 %v662
        %776 = vmatprep.subr.mxu0 0.0
        %777 = vmatpush1.msra.mxu0 %v661
        %778 = vmatprep.subr.mxu0 0.0
        %779 = vmatpush1.msra.mxu0 %v660
        %780 = vmatprep.subr.mxu0 0.0
        %781 = vmatpush1.msra.mxu0 %v659
        %782 = vmatprep.subr.mxu0 0.0
        %783 = vmatpush1.msra.mxu0 %v658
        %784 = vmatprep.subr.mxu0 0.0
        %785 = vmatpush1.msra.mxu0 %v657
        %786 = vmatprep.subr.mxu0 0.0
        %787 = vmatpush1.msra.mxu0 %v656
        %788 = vmatprep.subr.mxu0 0.0
        %789 = vmatpush1.msra.mxu0 %v655
        %790 = vmatprep.subr.mxu0 0.0
        %791 = vmatpush1.msra.mxu0 %v654
        %792 = vmatprep.subr.mxu0 0.0
        %793 = vmatpush1.msra.mxu0 %v653
        %794 = vmatprep.subr.mxu0 0.0
        %795 = vmatpush1.msra.mxu0 %v652
        %796 = vmatprep.subr.mxu0 0.0
        %797 = vmatpush1.msra.mxu0 %v651
        %798 = vmatprep.subr.mxu0 0.0
        %799 = vmatpush1.msra.mxu0 %v650
        %800 = vmatprep.subr.mxu0 0.0
        %801 = vmatpush1.msra.mxu0 %v649
        %802 = vmatprep.subr.mxu0 0.0
        %803 = vmatpush1.msra.mxu0 %v648
        %804 = vmatprep.subr.mxu0 0.0
        %805 = vmatpush2.msra.mxu0 %v679
        %806 = vmatprep.subr.mxu0 0.0
        %807 = vmatpush2.msra.mxu0 %v678
        %808 = vmatprep.subr.mxu0 0.0
        %809 = vmatpush2.msra.mxu0 %v677
        %810 = vmatprep.subr.mxu0 0.0
        %811 = vmatpush2.msra.mxu0 %v676
        %812 = vmatprep.subr.mxu0 0.0
        %813 = vmatpush2.msra.mxu0 %v675
        %814 = vmatprep.subr.mxu0 0.0
        %815 = vmatpush2.msra.mxu0 %v674
        %816 = vmatprep.subr.mxu0 0.0
        %817 = vmatpush2.msra.mxu0 %v673
        %818 = vmatprep.subr.mxu0 0.0
        %819 = vmatpush2.msra.mxu0 %v672
        %820 = vmatprep.subr.mxu0 0.0
        %821 = vmatpush2.msra.mxu0 %v671
        %822 = vmatprep.subr.mxu0 0.0
        %823 = vmatpush2.msra.mxu0 %v670
        %824 = vmatprep.subr.mxu0 0.0
        %825 = vmatpush2.msra.mxu0 %v669
        %826 = vmatprep.subr.mxu0 0.0
        %827 = vmatpush2.msra.mxu0 %v668
        %828 = vmatprep.subr.mxu0 0.0
        %829 = vmatpush2.msra.mxu0 %v667
        %830 = vmatprep.subr.mxu0 0.0
        %831 = vmatpush2.msra.mxu0 %v666
        %832 = vmatprep.subr.mxu0 0.0
        %833 = vmatpush2.msra.mxu0 %v665
        %834 = vmatprep.subr.mxu0 0.0
        %835 = vmatpush2.msra.mxu0 %v664
        %836 = vmatprep.mubr.f32.mxu0 %v569
        %837 = vmatmul.mubr.f32.gmra.mxu0 %v568
        %v838 = vpop.f32.mrf.mxu0
        %v839 = vadd.f32 0.0, %v838
        %v840 = vpop.f32.mrf.mxu0
        %841 = vmatprep.mubr.f32.mxu0 %v574
        %842 = vmatmul.mubr.f32.gmra.mxu0 %v573
        %v843 = vpop.f32.mrf.mxu0
        %v844 = vadd.f32 0.0, %v843
        %v845 = vpop.f32.mrf.mxu0
        %846 = vmatprep.mubr.f32.mxu0 %v579
        %847 = vmatmul.mubr.f32.gmra.mxu0 %v578
        %v848 = vpop.f32.mrf.mxu0
        %v849 = vadd.f32 0.0, %v848
        %v850 = vpop.f32.mrf.mxu0
        %851 = vmatprep.mubr.f32.mxu0 %v584
        %852 = vmatmul.mubr.f32.gmra.mxu0 %v583
        %v853 = vpop.f32.mrf.mxu0
        %v854 = vadd.f32 0.0, %v853
        %v855 = vpop.f32.mrf.mxu0
        %856 = vmatprep.mubr.f32.mxu0 %v589
        %857 = vmatmul.mubr.f32.gmra.mxu0 %v588
        %v858 = vpop.f32.mrf.mxu0
        %v859 = vadd.f32 0.0, %v858
        %v860 = vpop.f32.mrf.mxu0
        %861 = vmatprep.mubr.f32.mxu0 %v594
        %862 = vmatmul.mubr.f32.gmra.mxu0 %v593
        %v863 = vpop.f32.mrf.mxu0
        %v864 = vadd.f32 0.0, %v863
        %v865 = vpop.f32.mrf.mxu0
        %866 = vmatprep.mubr.f32.mxu0 %v599
        %867 = vmatmul.mubr.f32.gmra.mxu0 %v598
        %v868 = vpop.f32.mrf.mxu0
        %v869 = vadd.f32 0.0, %v868
        %v870 = vpop.f32.mrf.mxu0
        %871 = vmatprep.mubr.f32.mxu0 %v604
        %872 = vmatmul.mubr.f32.gmra.mxu0 %v603
        %v873 = vpop.f32.mrf.mxu0
        %v874 = vadd.f32 0.0, %v873
        %v875 = vpop.f32.mrf.mxu0
        %876 = vmatprep.mubr.f32.mxu0 %v609
        %877 = vmatmul.mubr.f32.gmra.mxu0 %v608
        %v878 = vpop.f32.mrf.mxu0
        %v879 = vadd.f32 0.0, %v878
        %v880 = vpop.f32.mrf.mxu0
        %881 = vmatprep.mubr.f32.mxu0 %v614
        %882 = vmatmul.mubr.f32.gmra.mxu0 %v613
        %v883 = vpop.f32.mrf.mxu0
        %v884 = vadd.f32 0.0, %v883
        %v885 = vpop.f32.mrf.mxu0
        %886 = vmatprep.mubr.f32.mxu0 %v619
        %887 = vmatmul.mubr.f32.gmra.mxu0 %v618
        %v888 = vpop.f32.mrf.mxu0
        %v889 = vadd.f32 0.0, %v888
        %v890 = vpop.f32.mrf.mxu0
        %891 = vmatprep.mubr.f32.mxu0 %v624
        %892 = vmatmul.mubr.f32.gmra.mxu0 %v623
        %v893 = vpop.f32.mrf.mxu0
        %v894 = vadd.f32 0.0, %v893
        %v895 = vpop.f32.mrf.mxu0
        %896 = vmatprep.mubr.f32.mxu0 %v629
        %897 = vmatmul.mubr.f32.gmra.mxu0 %v628
        %v898 = vpop.f32.mrf.mxu0
        %v899 = vadd.f32 0.0, %v898
        %v900 = vpop.f32.mrf.mxu0
        %901 = vmatprep.mubr.f32.mxu0 %v634
        %902 = vmatmul.mubr.f32.gmra.mxu0 %v633
        %v903 = vpop.f32.mrf.mxu0
        %v904 = vadd.f32 0.0, %v903
        %v905 = vpop.f32.mrf.mxu0
        %906 = vmatprep.mubr.f32.mxu0 %v639
        %907 = vmatmul.mubr.f32.gmra.mxu0 %v638
        %v908 = vpop.f32.mrf.mxu0
        %v909 = vadd.f32 0.0, %v908
        %v910 = vpop.f32.mrf.mxu0
        %911 = vmatprep.mubr.f32.mxu0 %v644
        %912 = vmatmul.mubr.f32.gmra.mxu0 %v643
        %v913 = vpop.f32.mrf.mxu0
        %v914 = vadd.f32 0.0, %v913
        %v915 = vpop.f32.mrf.mxu0
        %916 = vdwg.mxu0
        %917 = vmatprep.subr.mxu0 0.0
        %918 = vmatpush1.msra.mxu0 %v695
        %919 = vmatprep.subr.mxu0 0.0
        %920 = vmatpush1.msra.mxu0 %v694
        %921 = vmatprep.subr.mxu0 0.0
        %922 = vmatpush1.msra.mxu0 %v693
        %923 = vmatprep.subr.mxu0 0.0
        %924 = vmatpush1.msra.mxu0 %v692
        %925 = vmatprep.subr.mxu0 0.0
        %926 = vmatpush1.msra.mxu0 %v691
        %927 = vmatprep.subr.mxu0 0.0
        %928 = vmatpush1.msra.mxu0 %v690
        %929 = vmatprep.subr.mxu0 0.0
        %930 = vmatpush1.msra.mxu0 %v689
        %931 = vmatprep.subr.mxu0 0.0
        %932 = vmatpush1.msra.mxu0 %v688
        %933 = vmatprep.subr.mxu0 0.0
        %934 = vmatpush1.msra.mxu0 %v687
        %935 = vmatprep.subr.mxu0 0.0
        %936 = vmatpush1.msra.mxu0 %v686
        %937 = vmatprep.subr.mxu0 0.0
        %938 = vmatpush1.msra.mxu0 %v685
        %939 = vmatprep.subr.mxu0 0.0
        %940 = vmatpush1.msra.mxu0 %v684
        %941 = vmatprep.subr.mxu0 0.0
        %942 = vmatpush1.msra.mxu0 %v683
        %943 = vmatprep.subr.mxu0 0.0
        %944 = vmatpush1.msra.mxu0 %v682
        %945 = vmatprep.subr.mxu0 0.0
        %946 = vmatpush1.msra.mxu0 %v681
        %947 = vmatprep.subr.mxu0 0.0
        %948 = vmatpush1.msra.mxu0 %v680
        %949 = vmatprep.subr.mxu0 0.0
        %950 = vmatpush2.msra.mxu0 %v711
        %951 = vmatprep.subr.mxu0 0.0
        %952 = vmatpush2.msra.mxu0 %v710
        %953 = vmatprep.subr.mxu0 0.0
        %954 = vmatpush2.msra.mxu0 %v709
        %955 = vmatprep.subr.mxu0 0.0
        %956 = vmatpush2.msra.mxu0 %v708
        %957 = vmatprep.subr.mxu0 0.0
        %958 = vmatpush2.msra.mxu0 %v707
        %959 = vmatprep.subr.mxu0 0.0
        %960 = vmatpush2.msra.mxu0 %v706
        %961 = vmatprep.subr.mxu0 0.0
        %962 = vmatpush2.msra.mxu0 %v705
        %963 = vmatprep.subr.mxu0 0.0
        %964 = vmatpush2.msra.mxu0 %v704
        %965 = vmatprep.subr.mxu0 0.0
        %966 = vmatpush2.msra.mxu0 %v703
        %967 = vmatprep.subr.mxu0 0.0
        %968 = vmatpush2.msra.mxu0 %v702
        %969 = vmatprep.subr.mxu0 0.0
        %970 = vmatpush2.msra.mxu0 %v701
        %971 = vmatprep.subr.mxu0 0.0
        %972 = vmatpush2.msra.mxu0 %v700
        %973 = vmatprep.subr.mxu0 0.0
        %974 = vmatpush2.msra.mxu0 %v699
        %975 = vmatprep.subr.mxu0 0.0
        %976 = vmatpush2.msra.mxu0 %v698
        %977 = vmatprep.subr.mxu0 0.0
        %978 = vmatpush2.msra.mxu0 %v697
        %979 = vmatprep.subr.mxu0 0.0
        %980 = vmatpush2.msra.mxu0 %v696
        %981 = vmatprep.mubr.f32.mxu0 %v571
        %982 = vmatmul.mubr.f32.gmra.mxu0 %v570
        %v983 = vpop.f32.mrf.mxu0
        %v984 = vadd.f32 %v839, %v983
        %v985 = vpop.f32.mrf.mxu0
        %986 = vmatprep.mubr.f32.mxu0 %v576
        %987 = vmatmul.mubr.f32.gmra.mxu0 %v575
        %v988 = vpop.f32.mrf.mxu0
        %v989 = vadd.f32 %v844, %v988
        %v990 = vpop.f32.mrf.mxu0
        %991 = vmatprep.mubr.f32.mxu0 %v581
        %992 = vmatmul.mubr.f32.gmra.mxu0 %v580
        %v993 = vpop.f32.mrf.mxu0
        %v994 = vadd.f32 %v849, %v993
        %v995 = vpop.f32.mrf.mxu0
        %996 = vmatprep.mubr.f32.mxu0 %v586
        %997 = vmatmul.mubr.f32.gmra.mxu0 %v585
        %v998 = vpop.f32.mrf.mxu0
        %v999 = vadd.f32 %v854, %v998
        %v1000 = vpop.f32.mrf.mxu0
        %1001 = vmatprep.mubr.f32.mxu0 %v591
        %1002 = vmatmul.mubr.f32.gmra.mxu0 %v590
        %v1003 = vpop.f32.mrf.mxu0
        %v1004 = vadd.f32 %v859, %v1003
        %v1005 = vpop.f32.mrf.mxu0
        %1006 = vmatprep.mubr.f32.mxu0 %v596
        %1007 = vmatmul.mubr.f32.gmra.mxu0 %v595
        %v1008 = vpop.f32.mrf.mxu0
        %v1009 = vadd.f32 %v864, %v1008
        %v1010 = vpop.f32.mrf.mxu0
        %1011 = vmatprep.mubr.f32.mxu0 %v601
        %1012 = vmatmul.mubr.f32.gmra.mxu0 %v600
        %v1013 = vpop.f32.mrf.mxu0
        %v1014 = vadd.f32 %v869, %v1013
        %v1015 = vpop.f32.mrf.mxu0
        %1016 = vmatprep.mubr.f32.mxu0 %v606
        %1017 = vmatmul.mubr.f32.gmra.mxu0 %v605
        %v1018 = vpop.f32.mrf.mxu0
        %v1019 = vadd.f32 %v874, %v1018
        %v1020 = vpop.f32.mrf.mxu0
        %1021 = vmatprep.mubr.f32.mxu0 %v611
        %1022 = vmatmul.mubr.f32.gmra.mxu0 %v610
        %v1023 = vpop.f32.mrf.mxu0
        %v1024 = vadd.f32 %v879, %v1023
        %v1025 = vpop.f32.mrf.mxu0
        %1026 = vmatprep.mubr.f32.mxu0 %v616
        %1027 = vmatmul.mubr.f32.gmra.mxu0 %v615
        %v1028 = vpop.f32.mrf.mxu0
        %v1029 = vadd.f32 %v884, %v1028
        %v1030 = vpop.f32.mrf.mxu0
        %1031 = vmatprep.mubr.f32.mxu0 %v621
        %1032 = vmatmul.mubr.f32.gmra.mxu0 %v620
        %v1033 = vpop.f32.mrf.mxu0
        %v1034 = vadd.f32 %v889, %v1033
        %v1035 = vpop.f32.mrf.mxu0
        %1036 = vmatprep.mubr.f32.mxu0 %v626
        %1037 = vmatmul.mubr.f32.gmra.mxu0 %v625
        %v1038 = vpop.f32.mrf.mxu0
        %v1039 = vadd.f32 %v894, %v1038
        %v1040 = vpop.f32.mrf.mxu0
        %1041 = vmatprep.mubr.f32.mxu0 %v631
        %1042 = vmatmul.mubr.f32.gmra.mxu0 %v630
        %v1043 = vpop.f32.mrf.mxu0
        %v1044 = vadd.f32 %v899, %v1043
        %v1045 = vpop.f32.mrf.mxu0
        %1046 = vmatprep.mubr.f32.mxu0 %v636
        %1047 = vmatmul.mubr.f32.gmra.mxu0 %v635
        %v1048 = vpop.f32.mrf.mxu0
        %v1049 = vadd.f32 %v904, %v1048
        %v1050 = vpop.f32.mrf.mxu0
        %1051 = vmatprep.mubr.f32.mxu0 %v641
        %1052 = vmatmul.mubr.f32.gmra.mxu0 %v640
        %v1053 = vpop.f32.mrf.mxu0
        %v1054 = vadd.f32 %v909, %v1053
        %v1055 = vpop.f32.mrf.mxu0
        %1056 = vmatprep.mubr.f32.mxu0 %v646
        %1057 = vmatmul.mubr.f32.gmra.mxu0 %v645
        %v1058 = vpop.f32.mrf.mxu0
        %v1059 = vadd.f32 %v914, %v1058
        %v1060 = vpop.f32.mrf.mxu0
        %1061 = vdwg.mxu0
        %1062 = vmatprep.subr.mxu0 0.0
        %1063 = vmatpush1.msra.mxu0 0.0
        %1064 = vmatprep.subr.mxu0 0.0
        %1065 = vmatpush1.msra.mxu0 0.0
        %1066 = vmatprep.subr.mxu0 0.0
        %1067 = vmatpush1.msra.mxu0 0.0
        %1068 = vmatprep.subr.mxu0 0.0
        %1069 = vmatpush1.msra.mxu0 0.0
        %1070 = vmatprep.subr.mxu0 0.0
        %1071 = vmatpush1.msra.mxu0 0.0
        %1072 = vmatprep.subr.mxu0 0.0
        %1073 = vmatpush1.msra.mxu0 %v722
        %1074 = vmatprep.subr.mxu0 0.0
        %1075 = vmatpush1.msra.mxu0 %v721
        %1076 = vmatprep.subr.mxu0 0.0
        %1077 = vmatpush1.msra.mxu0 %v720
        %1078 = vmatprep.subr.mxu0 0.0
        %1079 = vmatpush1.msra.mxu0 %v719
        %1080 = vmatprep.subr.mxu0 0.0
        %1081 = vmatpush1.msra.mxu0 %v718
        %1082 = vmatprep.subr.mxu0 0.0
        %1083 = vmatpush1.msra.mxu0 %v717
        %1084 = vmatprep.subr.mxu0 0.0
        %1085 = vmatpush1.msra.mxu0 %v716
        %1086 = vmatprep.subr.mxu0 0.0
        %1087 = vmatpush1.msra.mxu0 %v715
        %1088 = vmatprep.subr.mxu0 0.0
        %1089 = vmatpush1.msra.mxu0 %v714
        %1090 = vmatprep.subr.mxu0 0.0
        %1091 = vmatpush1.msra.mxu0 %v713
        %1092 = vmatprep.subr.mxu0 0.0
        %1093 = vmatpush1.msra.mxu0 %v712
        %1094 = vmatprep.subr.mxu0 0.0
        %1095 = vmatpush2.msra.mxu0 0.0
        %1096 = vmatprep.subr.mxu0 0.0
        %1097 = vmatpush2.msra.mxu0 0.0
        %1098 = vmatprep.subr.mxu0 0.0
        %1099 = vmatpush2.msra.mxu0 0.0
        %1100 = vmatprep.subr.mxu0 0.0
        %1101 = vmatpush2.msra.mxu0 0.0
        %1102 = vmatprep.subr.mxu0 0.0
        %1103 = vmatpush2.msra.mxu0 0.0
        %1104 = vmatprep.subr.mxu0 0.0
        %1105 = vmatpush2.msra.mxu0 0.0
        %1106 = vmatprep.subr.mxu0 0.0
        %1107 = vmatpush2.msra.mxu0 0.0
        %1108 = vmatprep.subr.mxu0 0.0
        %1109 = vmatpush2.msra.mxu0 0.0
        %1110 = vmatprep.subr.mxu0 0.0
        %1111 = vmatpush2.msra.mxu0 0.0
        %1112 = vmatprep.subr.mxu0 0.0
        %1113 = vmatpush2.msra.mxu0 0.0
        %1114 = vmatprep.subr.mxu0 0.0
        %1115 = vmatpush2.msra.mxu0 0.0
        %1116 = vmatprep.subr.mxu0 0.0
        %1117 = vmatpush2.msra.mxu0 0.0
        %1118 = vmatprep.subr.mxu0 0.0
        %1119 = vmatpush2.msra.mxu0 0.0
        %1120 = vmatprep.subr.mxu0 0.0
        %1121 = vmatpush2.msra.mxu0 0.0
        %1122 = vmatprep.subr.mxu0 0.0
        %1123 = vmatpush2.msra.mxu0 0.0
        %1124 = vmatprep.subr.mxu0 0.0
        %1125 = vmatpush2.msra.mxu0 0.0
        %1126 = vmatprep.mubr.f32.mxu0 0.0
        %1127 = vmatmul.mubr.f32.gmra.mxu0 %v725
        %v1128 = vpop.f32.mrf.mxu0
        %v1129 = vadd.f32 %v984, %v1128
        %v1130 = vpop.f32.mrf.mxu0
        %1131 = vmatprep.mubr.f32.mxu0 0.0
        %1132 = vmatmul.mubr.f32.gmra.mxu0 %v728
        %v1133 = vpop.f32.mrf.mxu0
        %v1134 = vadd.f32 %v989, %v1133
        %v1135 = vpop.f32.mrf.mxu0
        %1136 = vmatprep.mubr.f32.mxu0 0.0
        %1137 = vmatmul.mubr.f32.gmra.mxu0 %v731
        %v1138 = vpop.f32.mrf.mxu0
        %v1139 = vadd.f32 %v994, %v1138
        %v1140 = vpop.f32.mrf.mxu0
        %1141 = vmatprep.mubr.f32.mxu0 0.0
        %1142 = vmatmul.mubr.f32.gmra.mxu0 %v734
        %v1143 = vpop.f32.mrf.mxu0
        %v1144 = vadd.f32 %v999, %v1143
        %v1145 = vpop.f32.mrf.mxu0
        %1146 = vmatprep.mubr.f32.mxu0 0.0
        %1147 = vmatmul.mubr.f32.gmra.mxu0 %v737
        %v1148 = vpop.f32.mrf.mxu0
        %v1149 = vadd.f32 %v1004, %v1148
        %v1150 = vpop.f32.mrf.mxu0
        %1151 = vmatprep.mubr.f32.mxu0 0.0
        %1152 = vmatmul.mubr.f32.gmra.mxu0 %v740
        %v1153 = vpop.f32.mrf.mxu0
        %v1154 = vadd.f32 %v1009, %v1153
        %v1155 = vpop.f32.mrf.mxu0
        %1156 = vmatprep.mubr.f32.mxu0 0.0
        %1157 = vmatmul.mubr.f32.gmra.mxu0 %v743
        %v1158 = vpop.f32.mrf.mxu0
        %v1159 = vadd.f32 %v1014, %v1158
        %v1160 = vpop.f32.mrf.mxu0
        %1161 = vmatprep.mubr.f32.mxu0 0.0
        %1162 = vmatmul.mubr.f32.gmra.mxu0 %v746
        %v1163 = vpop.f32.mrf.mxu0
        %v1164 = vadd.f32 %v1019, %v1163
        %v1165 = vpop.f32.mrf.mxu0
        %1166 = vmatprep.mubr.f32.mxu0 0.0
        %1167 = vmatmul.mubr.f32.gmra.mxu0 %v749
        %v1168 = vpop.f32.mrf.mxu0
        %v1169 = vadd.f32 %v1024, %v1168
        %v1170 = vpop.f32.mrf.mxu0
        %1171 = vmatprep.mubr.f32.mxu0 0.0
        %1172 = vmatmul.mubr.f32.gmra.mxu0 %v752
        %v1173 = vpop.f32.mrf.mxu0
        %v1174 = vadd.f32 %v1029, %v1173
        %v1175 = vpop.f32.mrf.mxu0
        %1176 = vmatprep.mubr.f32.mxu0 0.0
        %1177 = vmatmul.mubr.f32.gmra.mxu0 %v755
        %v1178 = vpop.f32.mrf.mxu0
        %v1179 = vadd.f32 %v1034, %v1178
        %v1180 = vpop.f32.mrf.mxu0
        %1181 = vmatprep.mubr.f32.mxu0 0.0
        %1182 = vmatmul.mubr.f32.gmra.mxu0 %v758
        %v1183 = vpop.f32.mrf.mxu0
        %v1184 = vadd.f32 %v1039, %v1183
        %v1185 = vpop.f32.mrf.mxu0
        %1186 = vmatprep.mubr.f32.mxu0 0.0
        %1187 = vmatmul.mubr.f32.gmra.mxu0 %v761
        %v1188 = vpop.f32.mrf.mxu0
        %v1189 = vadd.f32 %v1044, %v1188
        %v1190 = vpop.f32.mrf.mxu0
        %1191 = vmatprep.mubr.f32.mxu0 0.0
        %1192 = vmatmul.mubr.f32.gmra.mxu0 %v764
        %v1193 = vpop.f32.mrf.mxu0
        %v1194 = vadd.f32 %v1049, %v1193
        %v1195 = vpop.f32.mrf.mxu0
        %1196 = vmatprep.mubr.f32.mxu0 0.0
        %1197 = vmatmul.mubr.f32.gmra.mxu0 %v767
        %v1198 = vpop.f32.mrf.mxu0
        %v1199 = vadd.f32 %v1054, %v1198
        %v1200 = vpop.f32.mrf.mxu0
        %1201 = vmatprep.mubr.f32.mxu0 0.0
        %1202 = vmatmul.mubr.f32.gmra.mxu0 %v770
        %v1203 = vpop.f32.mrf.mxu0
        %v1204 = vadd.f32 %v1059, %v1203
        %v1205 = vpop.f32.mrf.mxu0
        %1206 = vdwg.mxu0
        %v1208 = vsel %vm723, %v417, 0
        %v1211 = vsel %vm723, %v422, 0
        %v1214 = vsel %vm723, %v427, 0
        %v1217 = vsel %vm723, %v432, 0
        %v1220 = vsel %vm723, %v437, 0
        %v1223 = vsel %vm723, %v442, 0
        %v1226 = vsel %vm723, %v447, 0
        %v1229 = vsel %vm723, %v452, 0
        %v1232 = vsel %vm723, %v457, 0
        %v1235 = vsel %vm723, %v462, 0
        %v1238 = vsel %vm723, %v467, 0
        %v1241 = vsel %vm723, %v472, 0
        %v1244 = vsel %vm723, %v477, 0
        %v1247 = vsel %vm723, %v482, 0
        %v1250 = vsel %vm723, %v487, 0
        %v1253 = vsel %vm723, %v492, 0
        %1255 = vmatprep.subr.mxu0 0.0
        %1256 = vmatpush1.msra.mxu0 %v508
        %1257 = vmatprep.subr.mxu0 0.0
        %1258 = vmatpush1.msra.mxu0 %v507
        %1259 = vmatprep.subr.mxu0 0.0
        %1260 = vmatpush1.msra.mxu0 %v506
        %1261 = vmatprep.subr.mxu0 0.0
        %1262 = vmatpush1.msra.mxu0 %v505
        %1263 = vmatprep.subr.mxu0 0.0
        %1264 = vmatpush1.msra.mxu0 %v504
        %1265 = vmatprep.subr.mxu0 0.0
        %1266 = vmatpush1.msra.mxu0 %v503
        %1267 = vmatprep.subr.mxu0 0.0
        %1268 = vmatpush1.msra.mxu0 %v502
        %1269 = vmatprep.subr.mxu0 0.0
        %1270 = vmatpush1.msra.mxu0 %v501
        %1271 = vmatprep.subr.mxu0 0.0
        %1272 = vmatpush1.msra.mxu0 %v500
        %1273 = vmatprep.subr.mxu0 0.0
        %1274 = vmatpush1.msra.mxu0 %v499
        %1275 = vmatprep.subr.mxu0 0.0
        %1276 = vmatpush1.msra.mxu0 %v498
        %1277 = vmatprep.subr.mxu0 0.0
        %1278 = vmatpush1.msra.mxu0 %v497
        %1279 = vmatprep.subr.mxu0 0.0
        %1280 = vmatpush1.msra.mxu0 %v496
        %1281 = vmatprep.subr.mxu0 0.0
        %1282 = vmatpush1.msra.mxu0 %v495
        %1283 = vmatprep.subr.mxu0 0.0
        %1284 = vmatpush1.msra.mxu0 %v494
        %1285 = vmatprep.subr.mxu0 0.0
        %1286 = vmatpush1.msra.mxu0 %v493
        %1287 = vmatprep.subr.mxu0 0.0
        %1288 = vmatpush2.msra.mxu0 %v524
        %1289 = vmatprep.subr.mxu0 0.0
        %1290 = vmatpush2.msra.mxu0 %v523
        %1291 = vmatprep.subr.mxu0 0.0
        %1292 = vmatpush2.msra.mxu0 %v522
        %1293 = vmatprep.subr.mxu0 0.0
        %1294 = vmatpush2.msra.mxu0 %v521
        %1295 = vmatprep.subr.mxu0 0.0
        %1296 = vmatpush2.msra.mxu0 %v520
        %1297 = vmatprep.subr.mxu0 0.0
        %1298 = vmatpush2.msra.mxu0 %v519
        %1299 = vmatprep.subr.mxu0 0.0
        %1300 = vmatpush2.msra.mxu0 %v518
        %1301 = vmatprep.subr.mxu0 0.0
        %1302 = vmatpush2.msra.mxu0 %v517
        %1303 = vmatprep.subr.mxu0 0.0
        %1304 = vmatpush2.msra.mxu0 %v516
        %1305 = vmatprep.subr.mxu0 0.0
        %1306 = vmatpush2.msra.mxu0 %v515
        %1307 = vmatprep.subr.mxu0 0.0
        %1308 = vmatpush2.msra.mxu0 %v514
        %1309 = vmatprep.subr.mxu0 0.0
        %1310 = vmatpush2.msra.mxu0 %v513
        %1311 = vmatprep.subr.mxu0 0.0
        %1312 = vmatpush2.msra.mxu0 %v512
        %1313 = vmatprep.subr.mxu0 0.0
        %1314 = vmatpush2.msra.mxu0 %v511
        %1315 = vmatprep.subr.mxu0 0.0
        %1316 = vmatpush2.msra.mxu0 %v510
        %1317 = vmatprep.subr.mxu0 0.0
        %1318 = vmatpush2.msra.mxu0 %v509
        %1319 = vmatprep.mubr.f32.mxu0 %v414
        %1320 = vmatmul.mubr.f32.gmra.mxu0 %v413
        %v1321 = vpop.f32.mrf.mxu0
        %v1322 = vadd.f32 %v1129, %v1321
        %v1323 = vpop.f32.mrf.mxu0
        %1324 = vmatprep.mubr.f32.mxu0 %v419
        %1325 = vmatmul.mubr.f32.gmra.mxu0 %v418
        %v1326 = vpop.f32.mrf.mxu0
        %v1327 = vadd.f32 %v1134, %v1326
        %v1328 = vpop.f32.mrf.mxu0
        %1329 = vmatprep.mubr.f32.mxu0 %v424
        %1330 = vmatmul.mubr.f32.gmra.mxu0 %v423
        %v1331 = vpop.f32.mrf.mxu0
        %v1332 = vadd.f32 %v1139, %v1331
        %v1333 = vpop.f32.mrf.mxu0
        %1334 = vmatprep.mubr.f32.mxu0 %v429
        %1335 = vmatmul.mubr.f32.gmra.mxu0 %v428
        %v1336 = vpop.f32.mrf.mxu0
        %v1337 = vadd.f32 %v1144, %v1336
        %v1338 = vpop.f32.mrf.mxu0
        %1339 = vmatprep.mubr.f32.mxu0 %v434
        %1340 = vmatmul.mubr.f32.gmra.mxu0 %v433
        %v1341 = vpop.f32.mrf.mxu0
        %v1342 = vadd.f32 %v1149, %v1341
        %v1343 = vpop.f32.mrf.mxu0
        %1344 = vmatprep.mubr.f32.mxu0 %v439
        %1345 = vmatmul.mubr.f32.gmra.mxu0 %v438
        %v1346 = vpop.f32.mrf.mxu0
        %v1347 = vadd.f32 %v1154, %v1346
        %v1348 = vpop.f32.mrf.mxu0
        %1349 = vmatprep.mubr.f32.mxu0 %v444
        %1350 = vmatmul.mubr.f32.gmra.mxu0 %v443
        %v1351 = vpop.f32.mrf.mxu0
        %v1352 = vadd.f32 %v1159, %v1351
        %v1353 = vpop.f32.mrf.mxu0
        %1354 = vmatprep.mubr.f32.mxu0 %v449
        %1355 = vmatmul.mubr.f32.gmra.mxu0 %v448
        %v1356 = vpop.f32.mrf.mxu0
        %v1357 = vadd.f32 %v1164, %v1356
        %v1358 = vpop.f32.mrf.mxu0
        %1359 = vmatprep.mubr.f32.mxu0 %v454
        %1360 = vmatmul.mubr.f32.gmra.mxu0 %v453
        %v1361 = vpop.f32.mrf.mxu0
        %v1362 = vadd.f32 %v1169, %v1361
        %v1363 = vpop.f32.mrf.mxu0
        %1364 = vmatprep.mubr.f32.mxu0 %v459
        %1365 = vmatmul.mubr.f32.gmra.mxu0 %v458
        %v1366 = vpop.f32.mrf.mxu0
        %v1367 = vadd.f32 %v1174, %v1366
        %v1368 = vpop.f32.mrf.mxu0
        %1369 = vmatprep.mubr.f32.mxu0 %v464
        %1370 = vmatmul.mubr.f32.gmra.mxu0 %v463
        %v1371 = vpop.f32.mrf.mxu0
        %v1372 = vadd.f32 %v1179, %v1371
        %v1373 = vpop.f32.mrf.mxu0
        %1374 = vmatprep.mubr.f32.mxu0 %v469
        %1375 = vmatmul.mubr.f32.gmra.mxu0 %v468
        %v1376 = vpop.f32.mrf.mxu0
        %v1377 = vadd.f32 %v1184, %v1376
        %v1378 = vpop.f32.mrf.mxu0
        %1379 = vmatprep.mubr.f32.mxu0 %v474
        %1380 = vmatmul.mubr.f32.gmra.mxu0 %v473
        %v1381 = vpop.f32.mrf.mxu0
        %v1382 = vadd.f32 %v1189, %v1381
        %v1383 = vpop.f32.mrf.mxu0
        %1384 = vmatprep.mubr.f32.mxu0 %v479
        %1385 = vmatmul.mubr.f32.gmra.mxu0 %v478
        %v1386 = vpop.f32.mrf.mxu0
        %v1387 = vadd.f32 %v1194, %v1386
        %v1388 = vpop.f32.mrf.mxu0
        %1389 = vmatprep.mubr.f32.mxu0 %v484
        %1390 = vmatmul.mubr.f32.gmra.mxu0 %v483
        %v1391 = vpop.f32.mrf.mxu0
        %v1392 = vadd.f32 %v1199, %v1391
        %v1393 = vpop.f32.mrf.mxu0
        %1394 = vmatprep.mubr.f32.mxu0 %v489
        %1395 = vmatmul.mubr.f32.gmra.mxu0 %v488
        %v1396 = vpop.f32.mrf.mxu0
        %v1397 = vadd.f32 %v1204, %v1396
        %v1398 = vpop.f32.mrf.mxu0
        %1399 = vdwg.mxu0
        %1400 = vmatprep.subr.mxu0 0.0
        %1401 = vmatpush1.msra.mxu0 %v540
        %1402 = vmatprep.subr.mxu0 0.0
        %1403 = vmatpush1.msra.mxu0 %v539
        %1404 = vmatprep.subr.mxu0 0.0
        %1405 = vmatpush1.msra.mxu0 %v538
        %1406 = vmatprep.subr.mxu0 0.0
        %1407 = vmatpush1.msra.mxu0 %v537
        %1408 = vmatprep.subr.mxu0 0.0
        %1409 = vmatpush1.msra.mxu0 %v536
        %1410 = vmatprep.subr.mxu0 0.0
        %1411 = vmatpush1.msra.mxu0 %v535
        %1412 = vmatprep.subr.mxu0 0.0
        %1413 = vmatpush1.msra.mxu0 %v534
        %1414 = vmatprep.subr.mxu0 0.0
        %1415 = vmatpush1.msra.mxu0 %v533
        %1416 = vmatprep.subr.mxu0 0.0
        %1417 = vmatpush1.msra.mxu0 %v532
        %1418 = vmatprep.subr.mxu0 0.0
        %1419 = vmatpush1.msra.mxu0 %v531
        %1420 = vmatprep.subr.mxu0 0.0
        %1421 = vmatpush1.msra.mxu0 %v530
        %1422 = vmatprep.subr.mxu0 0.0
        %1423 = vmatpush1.msra.mxu0 %v529
        %1424 = vmatprep.subr.mxu0 0.0
        %1425 = vmatpush1.msra.mxu0 %v528
        %1426 = vmatprep.subr.mxu0 0.0
        %1427 = vmatpush1.msra.mxu0 %v527
        %1428 = vmatprep.subr.mxu0 0.0
        %1429 = vmatpush1.msra.mxu0 %v526
        %1430 = vmatprep.subr.mxu0 0.0
        %1431 = vmatpush1.msra.mxu0 %v525
        %1432 = vmatprep.subr.mxu0 0.0
        %1433 = vmatpush2.msra.mxu0 %v556
        %1434 = vmatprep.subr.mxu0 0.0
        %1435 = vmatpush2.msra.mxu0 %v555
        %1436 = vmatprep.subr.mxu0 0.0
        %1437 = vmatpush2.msra.mxu0 %v554
        %1438 = vmatprep.subr.mxu0 0.0
        %1439 = vmatpush2.msra.mxu0 %v553
        %1440 = vmatprep.subr.mxu0 0.0
        %1441 = vmatpush2.msra.mxu0 %v552
        %1442 = vmatprep.subr.mxu0 0.0
        %1443 = vmatpush2.msra.mxu0 %v551
        %1444 = vmatprep.subr.mxu0 0.0
        %1445 = vmatpush2.msra.mxu0 %v550
        %1446 = vmatprep.subr.mxu0 0.0
        %1447 = vmatpush2.msra.mxu0 %v549
        %1448 = vmatprep.subr.mxu0 0.0
        %1449 = vmatpush2.msra.mxu0 %v548
        %1450 = vmatprep.subr.mxu0 0.0
        %1451 = vmatpush2.msra.mxu0 %v547
        %1452 = vmatprep.subr.mxu0 0.0
        %1453 = vmatpush2.msra.mxu0 %v546
        %1454 = vmatprep.subr.mxu0 0.0
        %1455 = vmatpush2.msra.mxu0 %v545
        %1456 = vmatprep.subr.mxu0 0.0
        %1457 = vmatpush2.msra.mxu0 %v544
        %1458 = vmatprep.subr.mxu0 0.0
        %1459 = vmatpush2.msra.mxu0 %v543
        %1460 = vmatprep.subr.mxu0 0.0
        %1461 = vmatpush2.msra.mxu0 %v542
        %1462 = vmatprep.subr.mxu0 0.0
        %1463 = vmatpush2.msra.mxu0 %v541
        %1464 = vmatprep.mubr.f32.mxu0 %v416
        %1465 = vmatmul.mubr.f32.gmra.mxu0 %v415
        %v1466 = vpop.f32.mrf.mxu0
        %v1467 = vadd.f32 %v1322, %v1466
        %v1468 = vpop.f32.mrf.mxu0
        %1469 = vmatprep.mubr.f32.mxu0 %v421
        %1470 = vmatmul.mubr.f32.gmra.mxu0 %v420
        %v1471 = vpop.f32.mrf.mxu0
        %v1472 = vadd.f32 %v1327, %v1471
        %v1473 = vpop.f32.mrf.mxu0
        %1474 = vmatprep.mubr.f32.mxu0 %v426
        %1475 = vmatmul.mubr.f32.gmra.mxu0 %v425
        %v1476 = vpop.f32.mrf.mxu0
        %v1477 = vadd.f32 %v1332, %v1476
        %v1478 = vpop.f32.mrf.mxu0
        %1479 = vmatprep.mubr.f32.mxu0 %v431
        %1480 = vmatmul.mubr.f32.gmra.mxu0 %v430
        %v1481 = vpop.f32.mrf.mxu0
        %v1482 = vadd.f32 %v1337, %v1481
        %v1483 = vpop.f32.mrf.mxu0
        %1484 = vmatprep.mubr.f32.mxu0 %v436
        %1485 = vmatmul.mubr.f32.gmra.mxu0 %v435
        %v1486 = vpop.f32.mrf.mxu0
        %v1487 = vadd.f32 %v1342, %v1486
        %v1488 = vpop.f32.mrf.mxu0
        %1489 = vmatprep.mubr.f32.mxu0 %v441
        %1490 = vmatmul.mubr.f32.gmra.mxu0 %v440
        %v1491 = vpop.f32.mrf.mxu0
        %v1492 = vadd.f32 %v1347, %v1491
        %v1493 = vpop.f32.mrf.mxu0
        %1494 = vmatprep.mubr.f32.mxu0 %v446
        %1495 = vmatmul.mubr.f32.gmra.mxu0 %v445
        %v1496 = vpop.f32.mrf.mxu0
        %v1497 = vadd.f32 %v1352, %v1496
        %v1498 = vpop.f32.mrf.mxu0
        %1499 = vmatprep.mubr.f32.mxu0 %v451
        %1500 = vmatmul.mubr.f32.gmra.mxu0 %v450
        %v1501 = vpop.f32.mrf.mxu0
        %v1502 = vadd.f32 %v1357, %v1501
        %v1503 = vpop.f32.mrf.mxu0
        %1504 = vmatprep.mubr.f32.mxu0 %v456
        %1505 = vmatmul.mubr.f32.gmra.mxu0 %v455
        %v1506 = vpop.f32.mrf.mxu0
        %v1507 = vadd.f32 %v1362, %v1506
        %v1508 = vpop.f32.mrf.mxu0
        %1509 = vmatprep.mubr.f32.mxu0 %v461
        %1510 = vmatmul.mubr.f32.gmra.mxu0 %v460
        %v1511 = vpop.f32.mrf.mxu0
        %v1512 = vadd.f32 %v1367, %v1511
        %v1513 = vpop.f32.mrf.mxu0
        %1514 = vmatprep.mubr.f32.mxu0 %v466
        %1515 = vmatmul.mubr.f32.gmra.mxu0 %v465
        %v1516 = vpop.f32.mrf.mxu0
        %v1517 = vadd.f32 %v1372, %v1516
        %v1518 = vpop.f32.mrf.mxu0
        %1519 = vmatprep.mubr.f32.mxu0 %v471
        %1520 = vmatmul.mubr.f32.gmra.mxu0 %v470
        %v1521 = vpop.f32.mrf.mxu0
        %v1522 = vadd.f32 %v1377, %v1521
        %v1523 = vpop.f32.mrf.mxu0
        %1524 = vmatprep.mubr.f32.mxu0 %v476
        %1525 = vmatmul.mubr.f32.gmra.mxu0 %v475
        %v1526 = vpop.f32.mrf.mxu0
        %v1527 = vadd.f32 %v1382, %v1526
        %v1528 = vpop.f32.mrf.mxu0
        %1529 = vmatprep.mubr.f32.mxu0 %v481
        %1530 = vmatmul.mubr.f32.gmra.mxu0 %v480
        %v1531 = vpop.f32.mrf.mxu0
        %v1532 = vadd.f32 %v1387, %v1531
        %v1533 = vpop.f32.mrf.mxu0
        %1534 = vmatprep.mubr.f32.mxu0 %v486
        %1535 = vmatmul.mubr.f32.gmra.mxu0 %v485
        %v1536 = vpop.f32.mrf.mxu0
        %v1537 = vadd.f32 %v1392, %v1536
        %v1538 = vpop.f32.mrf.mxu0
        %1539 = vmatprep.mubr.f32.mxu0 %v491
        %1540 = vmatmul.mubr.f32.gmra.mxu0 %v490
        %v1541 = vpop.f32.mrf.mxu0
        %v1542 = vadd.f32 %v1397, %v1541
        %v1543 = vpop.f32.mrf.mxu0
        %1544 = vdwg.mxu0
        %1545 = vmatprep.subr.mxu0 0.0
        %1546 = vmatpush1.msra.mxu0 0.0
        %1547 = vmatprep.subr.mxu0 0.0
        %1548 = vmatpush1.msra.mxu0 0.0
        %1549 = vmatprep.subr.mxu0 0.0
        %1550 = vmatpush1.msra.mxu0 0.0
        %1551 = vmatprep.subr.mxu0 0.0
        %1552 = vmatpush1.msra.mxu0 0.0
        %1553 = vmatprep.subr.mxu0 0.0
        %1554 = vmatpush1.msra.mxu0 0.0
        %1555 = vmatprep.subr.mxu0 0.0
        %1556 = vmatpush1.msra.mxu0 %v567
        %1557 = vmatprep.subr.mxu0 0.0
        %1558 = vmatpush1.msra.mxu0 %v566
        %1559 = vmatprep.subr.mxu0 0.0
        %1560 = vmatpush1.msra.mxu0 %v565
        %1561 = vmatprep.subr.mxu0 0.0
        %1562 = vmatpush1.msra.mxu0 %v564
        %1563 = vmatprep.subr.mxu0 0.0
        %1564 = vmatpush1.msra.mxu0 %v563
        %1565 = vmatprep.subr.mxu0 0.0
        %1566 = vmatpush1.msra.mxu0 %v562
        %1567 = vmatprep.subr.mxu0 0.0
        %1568 = vmatpush1.msra.mxu0 %v561
        %1569 = vmatprep.subr.mxu0 0.0
        %1570 = vmatpush1.msra.mxu0 %v560
        %1571 = vmatprep.subr.mxu0 0.0
        %1572 = vmatpush1.msra.mxu0 %v559
        %1573 = vmatprep.subr.mxu0 0.0
        %1574 = vmatpush1.msra.mxu0 %v558
        %1575 = vmatprep.subr.mxu0 0.0
        %1576 = vmatpush1.msra.mxu0 %v557
        %1577 = vmatprep.subr.mxu0 0.0
        %1578 = vmatpush2.msra.mxu0 0.0
        %1579 = vmatprep.subr.mxu0 0.0
        %1580 = vmatpush2.msra.mxu0 0.0
        %1581 = vmatprep.subr.mxu0 0.0
        %1582 = vmatpush2.msra.mxu0 0.0
        %1583 = vmatprep.subr.mxu0 0.0
        %1584 = vmatpush2.msra.mxu0 0.0
        %1585 = vmatprep.subr.mxu0 0.0
        %1586 = vmatpush2.msra.mxu0 0.0
        %1587 = vmatprep.subr.mxu0 0.0
        %1588 = vmatpush2.msra.mxu0 0.0
        %1589 = vmatprep.subr.mxu0 0.0
        %1590 = vmatpush2.msra.mxu0 0.0
        %1591 = vmatprep.subr.mxu0 0.0
        %1592 = vmatpush2.msra.mxu0 0.0
        %1593 = vmatprep.subr.mxu0 0.0
        %1594 = vmatpush2.msra.mxu0 0.0
        %1595 = vmatprep.subr.mxu0 0.0
        %1596 = vmatpush2.msra.mxu0 0.0
        %1597 = vmatprep.subr.mxu0 0.0
        %1598 = vmatpush2.msra.mxu0 0.0
        %1599 = vmatprep.subr.mxu0 0.0
        %1600 = vmatpush2.msra.mxu0 0.0
        %1601 = vmatprep.subr.mxu0 0.0
        %1602 = vmatpush2.msra.mxu0 0.0
        %1603 = vmatprep.subr.mxu0 0.0
        %1604 = vmatpush2.msra.mxu0 0.0
        %1605 = vmatprep.subr.mxu0 0.0
        %1606 = vmatpush2.msra.mxu0 0.0
        %1607 = vmatprep.subr.mxu0 0.0
        %1608 = vmatpush2.msra.mxu0 0.0
        %1609 = vmatprep.mubr.f32.mxu0 0.0
        %1610 = vmatmul.mubr.f32.gmra.mxu0 %v1208
        %v1611 = vpop.f32.mrf.mxu0
        %v1612 = vadd.f32 %v1467, %v1611
        %v1613 = vpop.f32.mrf.mxu0
        %1614 = vmatprep.mubr.f32.mxu0 0.0
        %1615 = vmatmul.mubr.f32.gmra.mxu0 %v1211
        %v1616 = vpop.f32.mrf.mxu0
        %v1617 = vadd.f32 %v1472, %v1616
        %v1618 = vpop.f32.mrf.mxu0
        %1619 = vmatprep.mubr.f32.mxu0 0.0
        %1620 = vmatmul.mubr.f32.gmra.mxu0 %v1214
        %v1621 = vpop.f32.mrf.mxu0
        %v1622 = vadd.f32 %v1477, %v1621
        %v1623 = vpop.f32.mrf.mxu0
        %1624 = vmatprep.mubr.f32.mxu0 0.0
        %1625 = vmatmul.mubr.f32.gmra.mxu0 %v1217
        %v1626 = vpop.f32.mrf.mxu0
        %v1627 = vadd.f32 %v1482, %v1626
        %v1628 = vpop.f32.mrf.mxu0
        %1629 = vmatprep.mubr.f32.mxu0 0.0
        %1630 = vmatmul.mubr.f32.gmra.mxu0 %v1220
        %v1631 = vpop.f32.mrf.mxu0
        %v1632 = vadd.f32 %v1487, %v1631
        %v1633 = vpop.f32.mrf.mxu0
        %1634 = vmatprep.mubr.f32.mxu0 0.0
        %1635 = vmatmul.mubr.f32.gmra.mxu0 %v1223
        %v1636 = vpop.f32.mrf.mxu0
        %v1637 = vadd.f32 %v1492, %v1636
        %v1638 = vpop.f32.mrf.mxu0
        %1639 = vmatprep.mubr.f32.mxu0 0.0
        %1640 = vmatmul.mubr.f32.gmra.mxu0 %v1226
        %v1641 = vpop.f32.mrf.mxu0
        %v1642 = vadd.f32 %v1497, %v1641
        %v1643 = vpop.f32.mrf.mxu0
        %1644 = vmatprep.mubr.f32.mxu0 0.0
        %1645 = vmatmul.mubr.f32.gmra.mxu0 %v1229
        %v1646 = vpop.f32.mrf.mxu0
        %v1647 = vadd.f32 %v1502, %v1646
        %v1648 = vpop.f32.mrf.mxu0
        %1649 = vmatprep.mubr.f32.mxu0 0.0
        %1650 = vmatmul.mubr.f32.gmra.mxu0 %v1232
        %v1651 = vpop.f32.mrf.mxu0
        %v1652 = vadd.f32 %v1507, %v1651
        %v1653 = vpop.f32.mrf.mxu0
        %1654 = vmatprep.mubr.f32.mxu0 0.0
        %1655 = vmatmul.mubr.f32.gmra.mxu0 %v1235
        %v1656 = vpop.f32.mrf.mxu0
        %v1657 = vadd.f32 %v1512, %v1656
        %v1658 = vpop.f32.mrf.mxu0
        %1659 = vmatprep.mubr.f32.mxu0 0.0
        %1660 = vmatmul.mubr.f32.gmra.mxu0 %v1238
        %v1661 = vpop.f32.mrf.mxu0
        %v1662 = vadd.f32 %v1517, %v1661
        %v1663 = vpop.f32.mrf.mxu0
        %1664 = vmatprep.mubr.f32.mxu0 0.0
        %1665 = vmatmul.mubr.f32.gmra.mxu0 %v1241
        %v1666 = vpop.f32.mrf.mxu0
        %v1667 = vadd.f32 %v1522, %v1666
        %v1668 = vpop.f32.mrf.mxu0
        %1669 = vmatprep.mubr.f32.mxu0 0.0
        %1670 = vmatmul.mubr.f32.gmra.mxu0 %v1244
        %v1671 = vpop.f32.mrf.mxu0
        %v1672 = vadd.f32 %v1527, %v1671
        %v1673 = vpop.f32.mrf.mxu0
        %1674 = vmatprep.mubr.f32.mxu0 0.0
        %1675 = vmatmul.mubr.f32.gmra.mxu0 %v1247
        %v1676 = vpop.f32.mrf.mxu0
        %v1677 = vadd.f32 %v1532, %v1676
        %v1678 = vpop.f32.mrf.mxu0
        %1679 = vmatprep.mubr.f32.mxu0 0.0
        %1680 = vmatmul.mubr.f32.gmra.mxu0 %v1250
        %v1681 = vpop.f32.mrf.mxu0
        %v1682 = vadd.f32 %v1537, %v1681
        %v1683 = vpop.f32.mrf.mxu0
        %1684 = vmatprep.mubr.f32.mxu0 0.0
        %1685 = vmatmul.mubr.f32.gmra.mxu0 %v1253
        %v1686 = vpop.f32.mrf.mxu0
        %v1687 = vadd.f32 %v1542, %v1686
        %v1688 = vpop.f32.mrf.mxu0
        %1689 = vdwg.mxu0
        %v1690 = vld [vmem:[%s4] sm:$0x1]
        %v1692 = vlaneseq
        %v1693 = vshrl.u32 %v1692, 7
        %v1694 = vsub.s32 0, %v1693
        %v1695 = vrot.slane %v1690, %v1694
        %v1697 = vadd.f32 %v1612, %v1695
        %v1698 = vadd.f32 %v1617, %v1695
        %v1699 = vadd.f32 %v1622, %v1695
        %v1700 = vadd.f32 %v1627, %v1695
        %v1701 = vadd.f32 %v1632, %v1695
        %v1702 = vadd.f32 %v1637, %v1695
        %v1703 = vadd.f32 %v1642, %v1695
        %v1704 = vadd.f32 %v1647, %v1695
        %v1705 = vadd.f32 %v1652, %v1695
        %v1706 = vadd.f32 %v1657, %v1695
        %v1707 = vadd.f32 %v1662, %v1695
        %v1708 = vadd.f32 %v1667, %v1695
        %v1709 = vadd.f32 %v1672, %v1695
        %v1710 = vadd.f32 %v1677, %v1695
        %v1711 = vadd.f32 %v1682, %v1695
        %v1712 = vadd.f32 %v1687, %v1695
        %v1713 = vmax.f32 %v1697, 0.0
        %v1714 = vmax.f32 %v1698, 0.0
        %v1715 = vmax.f32 %v1699, 0.0
        %v1716 = vmax.f32 %v1700, 0.0
        %v1717 = vmax.f32 %v1701, 0.0
        %v1718 = vmax.f32 %v1702, 0.0
        %v1719 = vmax.f32 %v1703, 0.0
        %v1720 = vmax.f32 %v1704, 0.0
        %v1721 = vmax.f32 %v1705, 0.0
        %v1722 = vmax.f32 %v1706, 0.0
        %v1723 = vmax.f32 %v1707, 0.0
        %v1724 = vmax.f32 %v1708, 0.0
        %v1725 = vmax.f32 %v1709, 0.0
        %v1726 = vmax.f32 %v1710, 0.0
        %v1727 = vmax.f32 %v1711, 0.0
        %v1728 = vmax.f32 %v1712, 0.0
        %v1729 = vld [vmem:[%s5] sm:$0x1]
        %v1731 = vlaneseq
        %v1732 = vshrl.u32 %v1731, 7
        %v1733 = vsub.s32 0, %v1732
        %v1734 = vrot.slane %v1729, %v1733
        %v1736 = vmul.f32 %v1713, %v1734
        %v1737 = vmul.f32 %v1714, %v1734
        %v1738 = vmul.f32 %v1715, %v1734
        %v1739 = vmul.f32 %v1716, %v1734
        %v1740 = vmul.f32 %v1717, %v1734
        %v1741 = vmul.f32 %v1718, %v1734
        %v1742 = vmul.f32 %v1719, %v1734
        %v1743 = vmul.f32 %v1720, %v1734
        %v1744 = vmul.f32 %v1721, %v1734
        %v1745 = vmul.f32 %v1722, %v1734
        %v1746 = vmul.f32 %v1723, %v1734
        %v1747 = vmul.f32 %v1724, %v1734
        %v1748 = vmul.f32 %v1725, %v1734
        %v1749 = vmul.f32 %v1726, %v1734
        %v1750 = vmul.f32 %v1727, %v1734
        %v1751 = vmul.f32 %v1728, %v1734
        %vm1752 = vcmask 80896
        %v1753 = vsel %vm1752, %v1736, 0.0
        %1754 = vadd.xlane.f32.xlu0 %v1753
        %v1755 = vpop.xlane.xlu0 %1754
        %v1756 = vsel %vm1752, %v1737, 0.0
        %1757 = vadd.xlane.f32.xlu0 %v1756
        %v1758 = vpop.xlane.xlu0 %1757
        %v1759 = vsel %vm1752, %v1738, 0.0
        %1760 = vadd.xlane.f32.xlu0 %v1759
        %v1761 = vpop.xlane.xlu0 %1760
        %v1762 = vsel %vm1752, %v1739, 0.0
        %1763 = vadd.xlane.f32.xlu0 %v1762
        %v1764 = vpop.xlane.xlu0 %1763
        %v1765 = vsel %vm1752, %v1740, 0.0
        %1766 = vadd.xlane.f32.xlu0 %v1765
        %v1767 = vpop.xlane.xlu0 %1766
        %v1768 = vsel %vm1752, %v1741, 0.0
        %1769 = vadd.xlane.f32.xlu0 %v1768
        %v1770 = vpop.xlane.xlu0 %1769
        %v1771 = vsel %vm1752, %v1742, 0.0
        %1772 = vadd.xlane.f32.xlu0 %v1771
        %v1773 = vpop.xlane.xlu0 %1772
        %v1774 = vsel %vm1752, %v1743, 0.0
        %1775 = vadd.xlane.f32.xlu0 %v1774
        %v1776 = vpop.xlane.xlu0 %1775
        %v1777 = vsel %vm1752, %v1744, 0.0
        %1778 = vadd.xlane.f32.xlu0 %v1777
        %v1779 = vpop.xlane.xlu0 %1778
        %v1780 = vsel %vm1752, %v1745, 0.0
        %1781 = vadd.xlane.f32.xlu0 %v1780
        %v1782 = vpop.xlane.xlu0 %1781
        %v1783 = vsel %vm1752, %v1746, 0.0
        %1784 = vadd.xlane.f32.xlu0 %v1783
        %v1785 = vpop.xlane.xlu0 %1784
        %v1786 = vsel %vm1752, %v1747, 0.0
        %1787 = vadd.xlane.f32.xlu0 %v1786
        %v1788 = vpop.xlane.xlu0 %1787
        %v1789 = vsel %vm1752, %v1748, 0.0
        %1790 = vadd.xlane.f32.xlu0 %v1789
        %v1791 = vpop.xlane.xlu0 %1790
        %v1792 = vsel %vm1752, %v1749, 0.0
        %1793 = vadd.xlane.f32.xlu0 %v1792
        %v1794 = vpop.xlane.xlu0 %1793
        %v1795 = vsel %vm1752, %v1750, 0.0
        %1796 = vadd.xlane.f32.xlu0 %v1795
        %v1797 = vpop.xlane.xlu0 %1796
        %v1798 = vsel %vm1752, %v1751, 0.0
        %1799 = vadd.xlane.f32.xlu0 %v1798
        %v1800 = vpop.xlane.xlu0 %1799
        %v1801 = vld [vmem:[#allocation2] sm:$0x1]
        %v1803 = vlaneseq
        %v1804 = vshrl.u32 %v1803, 7
        %v1805 = vsub.s32 0, %v1804
        %v1806 = vrot.slane %v1801, %v1805
        %v1808 = vadd.f32 %v1755, %v1806
        %v1809 = vadd.f32 %v1758, %v1806
        %v1810 = vadd.f32 %v1761, %v1806
        %v1811 = vadd.f32 %v1764, %v1806
        %v1812 = vadd.f32 %v1767, %v1806
        %v1813 = vadd.f32 %v1770, %v1806
        %v1814 = vadd.f32 %v1773, %v1806
        %v1815 = vadd.f32 %v1776, %v1806
        %v1816 = vadd.f32 %v1779, %v1806
        %v1817 = vadd.f32 %v1782, %v1806
        %v1818 = vadd.f32 %v1785, %v1806
        %v1819 = vadd.f32 %v1788, %v1806
        %v1820 = vadd.f32 %v1791, %v1806
        %v1821 = vadd.f32 %v1794, %v1806
        %v1822 = vadd.f32 %v1797, %v1806
        %v1823 = vadd.f32 %v1800, %v1806
        %s1824 = smul.u32 %s31, 128
        %v1825 = vlaneseq
        %v1826 = vshrl.u32 %v1825, 7
        %v1827 = vadd.s32 %v1826, 8
        %v1828 = vadd.s32 %v1826, 16
        %v1829 = vadd.s32 %v1826, 24
        %v1830 = vadd.s32 %v1826, 32
        %v1831 = vadd.s32 %v1826, 40
        %v1832 = vadd.s32 %v1826, 48
        %v1833 = vadd.s32 %v1826, 56
        %v1834 = vadd.s32 %v1826, 64
        %v1835 = vadd.s32 %v1826, 72
        %v1836 = vadd.s32 %v1826, 80
        %v1837 = vadd.s32 %v1826, 88
        %v1838 = vadd.s32 %v1826, 96
        %v1839 = vadd.s32 %v1826, 104
        %v1840 = vadd.s32 %v1826, 112
        %v1841 = vadd.s32 %v1826, 120
        %v1842 = vstv %s1824
        %v1843 = vadd.s32 %v1842, %v1826
        %v1844 = vadd.s32 %v1842, %v1827
        %v1845 = vadd.s32 %v1842, %v1828
        %v1846 = vadd.s32 %v1842, %v1829
        %v1847 = vadd.s32 %v1842, %v1830
        %v1848 = vadd.s32 %v1842, %v1831
        %v1849 = vadd.s32 %v1842, %v1832
        %v1850 = vadd.s32 %v1842, %v1833
        %v1851 = vadd.s32 %v1842, %v1834
        %v1852 = vadd.s32 %v1842, %v1835
        %v1853 = vadd.s32 %v1842, %v1836
        %v1854 = vadd.s32 %v1842, %v1837
        %v1855 = vadd.s32 %v1842, %v1838
        %v1856 = vadd.s32 %v1842, %v1839
        %v1857 = vadd.s32 %v1842, %v1840
        %v1858 = vadd.s32 %v1842, %v1841
        %vm1859 = vcmp.lt.s32.totalorder %v1843, 300
        %vm1860 = vcmp.lt.s32.totalorder %v1844, 300
        %vm1861 = vcmp.lt.s32.totalorder %v1845, 300
        %vm1862 = vcmp.lt.s32.totalorder %v1846, 300
        %vm1863 = vcmp.lt.s32.totalorder %v1847, 300
        %vm1864 = vcmp.lt.s32.totalorder %v1848, 300
        %vm1865 = vcmp.lt.s32.totalorder %v1849, 300
        %vm1866 = vcmp.lt.s32.totalorder %v1850, 300
        %vm1867 = vcmp.lt.s32.totalorder %v1851, 300
        %vm1868 = vcmp.lt.s32.totalorder %v1852, 300
        %vm1869 = vcmp.lt.s32.totalorder %v1853, 300
        %vm1870 = vcmp.lt.s32.totalorder %v1854, 300
        %vm1871 = vcmp.lt.s32.totalorder %v1855, 300
        %vm1872 = vcmp.lt.s32.totalorder %v1856, 300
        %vm1873 = vcmp.lt.s32.totalorder %v1857, 300
        %vm1874 = vcmp.lt.s32.totalorder %v1858, 300
        %v1875 = vsel %vm1859, %v1808, -inf
        %v1876 = vsel %vm1860, %v1809, -inf
        %v1877 = vsel %vm1861, %v1810, -inf
        %v1878 = vsel %vm1862, %v1811, -inf
        %v1879 = vsel %vm1863, %v1812, -inf
        %v1880 = vsel %vm1864, %v1813, -inf
        %v1881 = vsel %vm1865, %v1814, -inf
        %v1882 = vsel %vm1866, %v1815, -inf
        %v1883 = vsel %vm1867, %v1816, -inf
        %v1884 = vsel %vm1868, %v1817, -inf
        %v1885 = vsel %vm1869, %v1818, -inf
        %v1886 = vsel %vm1870, %v1819, -inf
        %v1887 = vsel %vm1871, %v1820, -inf
        %v1888 = vsel %vm1872, %v1821, -inf
        %v1889 = vsel %vm1873, %v1822, -inf
        %v1890 = vsel %vm1874, %v1823, -inf
        %v1891 = vsel %vm1859, %v1808, 0.0
        %v1892 = vsel %vm1860, %v1809, 0.0
        %v1893 = vsel %vm1861, %v1810, 0.0
        %v1894 = vsel %vm1862, %v1811, 0.0
        %v1895 = vsel %vm1863, %v1812, 0.0
        %v1896 = vsel %vm1864, %v1813, 0.0
        %v1897 = vsel %vm1865, %v1814, 0.0
        %v1898 = vsel %vm1866, %v1815, 0.0
        %v1899 = vsel %vm1867, %v1816, 0.0
        %v1900 = vsel %vm1868, %v1817, 0.0
        %v1901 = vsel %vm1869, %v1818, 0.0
        %v1902 = vsel %vm1870, %v1819, 0.0
        %v1903 = vsel %vm1871, %v1820, 0.0
        %v1904 = vsel %vm1872, %v1821, 0.0
        %v1905 = vsel %vm1873, %v1822, 0.0
        %v1906 = vsel %vm1874, %v1823, 0.0
        %vm1907 = vcmask 7168
        %v1908 = vsel %vm1907, %v1891, 0.0
        %v1909 = vsel %vm1907, %v1892, 0.0
        %v1910 = vadd.f32 %v1908, %v1909
        %v1911 = vsel %vm1907, %v1893, 0.0
        %v1912 = vadd.f32 %v1910, %v1911
        %v1913 = vsel %vm1907, %v1894, 0.0
        %v1914 = vadd.f32 %v1912, %v1913
        %v1915 = vsel %vm1907, %v1895, 0.0
        %v1916 = vadd.f32 %v1914, %v1915
        %v1917 = vsel %vm1907, %v1896, 0.0
        %v1918 = vadd.f32 %v1916, %v1917
        %v1919 = vsel %vm1907, %v1897, 0.0
        %v1920 = vadd.f32 %v1918, %v1919
        %v1921 = vsel %vm1907, %v1898, 0.0
        %v1922 = vadd.f32 %v1920, %v1921
        %v1923 = vsel %vm1907, %v1899, 0.0
        %v1924 = vadd.f32 %v1922, %v1923
        %v1925 = vsel %vm1907, %v1900, 0.0
        %v1926 = vadd.f32 %v1924, %v1925
        %v1927 = vsel %vm1907, %v1901, 0.0
        %v1928 = vadd.f32 %v1926, %v1927
        %v1929 = vsel %vm1907, %v1902, 0.0
        %v1930 = vadd.f32 %v1928, %v1929
        %v1931 = vsel %vm1907, %v1903, 0.0
        %v1932 = vadd.f32 %v1930, %v1931
        %v1933 = vsel %vm1907, %v1904, 0.0
        %v1934 = vadd.f32 %v1932, %v1933
        %v1935 = vsel %vm1907, %v1905, 0.0
        %v1936 = vadd.f32 %v1934, %v1935
        %v1937 = vsel %vm1907, %v1906, 0.0
        %v1938 = vadd.f32 %v1936, %v1937
        %v1939 = vrot.slane %v1938, 4
        %v1940 = vadd.f32 %v1938, %v1939
        %v1941 = vrot.slane %v1940, 2
        %v1942 = vadd.f32 %v1940, %v1941
        %v1943 = vrot.slane %v1942, 1
        %v1944 = vadd.f32 %v1942, %v1943
        %v1945 = vsel %vm1907, %v1875, -inf
        %v1946 = vsel %vm1907, %v1876, -inf
        %v1947 = vsel %vm1907, %v1877, -inf
        %v1948 = vsel %vm1907, %v1878, -inf
        %v1949 = vsel %vm1907, %v1879, -inf
        %v1950 = vmax.f32 %v1945, %v1949
        %v1951 = vsel %vm1907, %v1880, -inf
        %v1952 = vmax.f32 %v1946, %v1951
        %v1953 = vsel %vm1907, %v1881, -inf
        %v1954 = vmax.f32 %v1947, %v1953
        %v1955 = vsel %vm1907, %v1882, -inf
        %v1956 = vmax.f32 %v1948, %v1955
        %v1957 = vsel %vm1907, %v1883, -inf
        %v1958 = vmax.f32 %v1950, %v1957
        %v1959 = vsel %vm1907, %v1884, -inf
        %v1960 = vmax.f32 %v1952, %v1959
        %v1961 = vsel %vm1907, %v1885, -inf
        %v1962 = vmax.f32 %v1954, %v1961
        %v1963 = vsel %vm1907, %v1886, -inf
        %v1964 = vmax.f32 %v1956, %v1963
        %v1965 = vsel %vm1907, %v1887, -inf
        %v1966 = vmax.f32 %v1958, %v1965
        %v1967 = vsel %vm1907, %v1888, -inf
        %v1968 = vmax.f32 %v1960, %v1967
        %v1969 = vsel %vm1907, %v1889, -inf
        %v1970 = vmax.f32 %v1962, %v1969
        %v1971 = vsel %vm1907, %v1890, -inf
        %v1972 = vmax.f32 %v1964, %v1971
        %v1973 = vmax.f32 %v1966, %v1968
        %v1974 = vmax.f32 %v1970, %v1972
        %v1975 = vmax.f32 %v1973, %v1974
        %v1976 = vrot.slane %v1975, 4
        %v1977 = vmax.f32 %v1975, %v1976
        %v1978 = vrot.slane %v1977, 2
        %v1979 = vmax.f32 %v1977, %v1978
        %v1980 = vrot.slane %v1979, 1
        %v1981 = vmax.f32 %v1979, %v1980
        %v1982 = vld [vmem:[#allocation9] sm:$0x1]
        %v1983 = vmax.f32 %v1982, %v1981
        %v1985 = vlaneseq
        %v1986 = vshrl.u32 %v1985, 7
        %v1987 = vsub.s32 0, %v1986
        %v1988 = vrot.slane %v1983, %v1987
        %v1990 = vsub.f32 %v1875, %v1988
        %v1991 = vsub.f32 %v1876, %v1988
        %v1992 = vsub.f32 %v1877, %v1988
        %v1993 = vsub.f32 %v1878, %v1988
        %v1994 = vsub.f32 %v1879, %v1988
        %v1995 = vsub.f32 %v1880, %v1988
        %v1996 = vsub.f32 %v1881, %v1988
        %v1997 = vsub.f32 %v1882, %v1988
        %v1998 = vsub.f32 %v1883, %v1988
        %v1999 = vsub.f32 %v1884, %v1988
        %v2000 = vsub.f32 %v1885, %v1988
        %v2001 = vsub.f32 %v1886, %v1988
        %v2002 = vsub.f32 %v1887, %v1988
        %v2003 = vsub.f32 %v1888, %v1988
        %v2004 = vsub.f32 %v1889, %v1988
        %v2005 = vsub.f32 %v1890, %v1988
        %v2006 = vmul.f32 %v1990, 1.442695
        %v2007 = vpow.pop %v2006
        %v2008 = vmul.f32 %v1991, 1.442695
        %v2009 = vpow.pop %v2008
        %v2010 = vmul.f32 %v1992, 1.442695
        %v2011 = vpow.pop %v2010
        %v2012 = vmul.f32 %v1993, 1.442695
        %v2013 = vpow.pop %v2012
        %v2014 = vmul.f32 %v1994, 1.442695
        %v2015 = vpow.pop %v2014
        %v2016 = vmul.f32 %v1995, 1.442695
        %v2017 = vpow.pop %v2016
        %v2018 = vmul.f32 %v1996, 1.442695
        %v2019 = vpow.pop %v2018
        %v2020 = vmul.f32 %v1997, 1.442695
        %v2021 = vpow.pop %v2020
        %v2022 = vmul.f32 %v1998, 1.442695
        %v2023 = vpow.pop %v2022
        %v2024 = vmul.f32 %v1999, 1.442695
        %v2025 = vpow.pop %v2024
        %v2026 = vmul.f32 %v2000, 1.442695
        %v2027 = vpow.pop %v2026
        %v2028 = vmul.f32 %v2001, 1.442695
        %v2029 = vpow.pop %v2028
        %v2030 = vmul.f32 %v2002, 1.442695
        %v2031 = vpow.pop %v2030
        %v2032 = vmul.f32 %v2003, 1.442695
        %v2033 = vpow.pop %v2032
        %v2034 = vmul.f32 %v2004, 1.442695
        %v2035 = vpow.pop %v2034
        %v2036 = vmul.f32 %v2005, 1.442695
        %v2037 = vpow.pop %v2036
        %v2038 = vsel %vm1907, %v2007, 0.0
        %v2039 = vsel %vm1907, %v2009, 0.0
        %v2040 = vadd.f32 %v2038, %v2039
        %v2041 = vsel %vm1907, %v2011, 0.0
        %v2042 = vadd.f32 %v2040, %v2041
        %v2043 = vsel %vm1907, %v2013, 0.0
        %v2044 = vadd.f32 %v2042, %v2043
        %v2045 = vsel %vm1907, %v2015, 0.0
        %v2046 = vadd.f32 %v2044, %v2045
        %v2047 = vsel %vm1907, %v2017, 0.0
        %v2048 = vadd.f32 %v2046, %v2047
        %v2049 = vsel %vm1907, %v2019, 0.0
        %v2050 = vadd.f32 %v2048, %v2049
        %v2051 = vsel %vm1907, %v2021, 0.0
        %v2052 = vadd.f32 %v2050, %v2051
        %v2053 = vsel %vm1907, %v2023, 0.0
        %v2054 = vadd.f32 %v2052, %v2053
        %v2055 = vsel %vm1907, %v2025, 0.0
        %v2056 = vadd.f32 %v2054, %v2055
        %v2057 = vsel %vm1907, %v2027, 0.0
        %v2058 = vadd.f32 %v2056, %v2057
        %v2059 = vsel %vm1907, %v2029, 0.0
        %v2060 = vadd.f32 %v2058, %v2059
        %v2061 = vsel %vm1907, %v2031, 0.0
        %v2062 = vadd.f32 %v2060, %v2061
        %v2063 = vsel %vm1907, %v2033, 0.0
        %v2064 = vadd.f32 %v2062, %v2063
        %v2065 = vsel %vm1907, %v2035, 0.0
        %v2066 = vadd.f32 %v2064, %v2065
        %v2067 = vsel %vm1907, %v2037, 0.0
        %v2068 = vadd.f32 %v2066, %v2067
        %v2069 = vrot.slane %v2068, 4
        %v2070 = vadd.f32 %v2068, %v2069
        %v2071 = vrot.slane %v2070, 2
        %v2072 = vadd.f32 %v2070, %v2071
        %v2073 = vrot.slane %v2072, 1
        %v2074 = vadd.f32 %v2072, %v2073
        %v2075 = vld [vmem:[#allocation11] sm:$0x1]
        %v2076 = vsub.f32 %v1982, %v1983
        %v2077 = vmul.f32 %v2076, 1.442695
        %v2078 = vpow.pop %v2077
        %v2079 = vmul.f32 %v2075, %v2078
        %v2080 = vadd.f32 %v2079, %v2074
        %vm2081 = vcmask 0
        %2082 = vst.msk [vmem:[#allocation11] sm:$0x1] %vm2081, %v2080
        %2083 = vst.msk [vmem:[#allocation9] sm:$0x1] %vm2081, %v1983
        %v2084 = vld [vmem:[#allocation8] sm:$0x1]
        %v2085 = vadd.f32 %v2084, %v1944
        %2086 = vst.msk [vmem:[#allocation8] sm:$0x1] %vm2081, %v2085
        // Predicated region
        $region61: #{tpu_custom_call.1} parent=47 // pred_check
          %p2087 = pneg %p201
        $region62: #{tpu_custom_call.1} parent=47 // pred_check_branch
          %2089 = sbr.rel (%p2087) target = $region64
        $region63: #{tpu_custom_call.1} parent=47 // pred_region
          %s2091 = ssub.s32 16, 16
          %2092 = vsyncadd [#allocation5], %s2091
          %s2094 = sshll.u32 [#allocation8], 4
          %s2095 = int_to_ptr.vmem [resolvable:$true] %s2094
          %2097 = dma.vmem_to_hbm [thread:$0]  %s2095, 16, %s7, [#allocation5]
        $region64: #{tpu_custom_call.1} parent=47 // pred_fallthru
          _
        // Predicated region
        $region65: #{tpu_custom_call.1} parent=47 // pred_check
          %p2098 = pneg %p222
        $region66: #{tpu_custom_call.1} parent=47 // pred_check_branch
          %2100 = sbr.rel (%p2098) target = $region68
        $region67: #{tpu_custom_call.1} parent=47 // pred_region
          %s2102 = ssub.s32 16, 16
          %2103 = vsyncadd [#allocation10], %s2102
          %s2105 = sshll.u32 [#allocation9], 4
          %s2106 = int_to_ptr.vmem [resolvable:$true] %s2105
          %2108 = dma.vmem_to_hbm [thread:$0]  %s2106, 16, %s8, [#allocation10]
        $region68: #{tpu_custom_call.1} parent=47 // pred_fallthru
          _
        // Predicated region
        $region69: #{tpu_custom_call.1} parent=47 // pred_check
          %p2109 = pneg %p243
        $region70: #{tpu_custom_call.1} parent=47 // pred_check_branch
          %2111 = sbr.rel (%p2109) target = $region72
        $region71: #{tpu_custom_call.1} parent=47 // pred_region
          %s2113 = ssub.s32 16, 16
          %2114 = vsyncadd [#allocation10], %s2113
          %s2116 = sshll.u32 [#allocation11], 4
          %s2117 = int_to_ptr.vmem [resolvable:$true] %s2116
          %2119 = dma.vmem_to_hbm [thread:$0]  %s2117, 16, %s9, [#allocation10]
        $region72: #{tpu_custom_call.1} parent=47 // pred_fallthru
          _
        // Predicated region
        $region73: #{tpu_custom_call.1} parent=47 // pred_check
          %p2120 = pneg %p201
        $region74: #{tpu_custom_call.1} parent=47 // pred_check_branch
          %2122 = sbr.rel (%p2120) target = $region76
        $region75: #{tpu_custom_call.1} parent=47 // pred_region
          %2123 = dma.done [#allocation5], 16
        $region76: #{tpu_custom_call.1} parent=47 // pred_fallthru
          _
        // Predicated region
        $region77: #{tpu_custom_call.1} parent=47 // pred_check
          %p2124 = pneg %p222
        $region78: #{tpu_custom_call.1} parent=47 // pred_check_branch
          %2126 = sbr.rel (%p2124) target = $region80
        $region79: #{tpu_custom_call.1} parent=47 // pred_region
          %2127 = dma.done [#allocation10], 16
        $region80: #{tpu_custom_call.1} parent=47 // pred_fallthru
          _
        // Predicated region
        $region81: #{tpu_custom_call.1} parent=47 // pred_check
          %p2128 = pneg %p243
        $region82: #{tpu_custom_call.1} parent=47 // pred_check_branch
          %2130 = sbr.rel (%p2128) target = $region84
        $region83: #{tpu_custom_call.1} parent=47 // pred_region
          %2131 = dma.done [#allocation10], 16
        $region84: #{tpu_custom_call.1} parent=47 // pred_fallthru
          _
      $region48: #{tpu_custom_call.1} parent=5 // pred_fallthru
        _
      %p2132 = scmp.le.s32.totalorder 2, %s26
      // Predicated region
      $region85: #{tpu_custom_call.1} parent=5 // pred_check
        %p2133 = pneg %p2132
      $region86: #{tpu_custom_call.1} parent=5 // pred_check_branch
        %2135 = sbr.rel (%p2133) target = $region88
      $region87: #{tpu_custom_call.1} parent=5 // pred_region
        %s2136 = ssub.s32 %s26, 2
      $region88: #{tpu_custom_call.1} parent=5 // pred_fallthru
        _
    $region6: #{tpu_custom_call.1} parent=1 // loop_footer
      %s30 = sadd.s32 1, %s26
    $region7: #{tpu_custom_call.1} parent=1 // loop_footer_branch
      %25 = sbr.rel target = $region3
    $region8: #{tpu_custom_call.1} parent=1 // loop_exit
      _
    %2137 = vsyncpa [#allocation4], 1
    %s2138 = scalar_lea.sflag [#allocation4], 1
    %2139 = vsyncpa %s2138, 1
    %2140 = vsyncpa [#allocation7], 1
    %s2141 = scalar_lea.sflag [#allocation7], 1
    %2142 = vsyncpa %s2141, 1
    %2143 = vsyncpa [#allocation5], 1
    %s2144 = scalar_lea.sflag [#allocation5], 1
    %2145 = vsyncpa %s2144, 1
    %2146 = vsyncpa [#allocation10], 1

</llo_original>
